<compile_context>
chip_gen: v7x
topology: tpu7x:2x2x1
jax: 0.10.0
libtpu: 0.0.40
codegen_flags: <defaults>
</compile_context>

<pallas_src>
import functools

import jax
import jax.numpy as jnp
from jax import lax
from jax.experimental import pallas as pl
from jax.experimental.pallas import tpu as pltpu

# ----------------------------- config (scaled-down) -----------------------------
VOCAB = 64
MAX_POS = 16
N_TYPES = 2
D = 128          # hidden size   (stand-in for 768)
NH = 2           # attention heads
DH = D // NH     # head dim
FF = 256         # intermediate size
LAYERS = 2
CLS_H = 32       # classifier hidden (stand-in for 100)
D_OUT = 5        # number of classes
LN_EPS = 1e-12

B = 2            # batch
S = 8            # sequence length


# ----------------------------- shared math helpers -----------------------------
def _gelu(x):
    # TODO(synk): HF BERT default is exact erf GELU; tanh approximation used here.
    c = 0.7978845608028654  # sqrt(2/pi)
    return 0.5 * x * (1.0 + jnp.tanh(c * (x + 0.044715 * x * x * x)))


def _layernorm(y, g, b, eps=LN_EPS):
    mu = jnp.mean(y, axis=-1, keepdims=True)
    var = jnp.mean((y - mu) * (y - mu), axis=-1, keepdims=True)
    return (y - mu) * lax.rsqrt(var + eps) * g + b


# ----------------------------- fused forward kernel -----------------------------
def _fused_bert_kernel(
        # inputs
        emb_ref, maskb_ref,
        wqkv_ref, bqkv_ref, wo_ref, bo_ref, ln1g_ref, ln1b_ref,
        w1_ref, b1_ref, w2_ref, b2_ref, ln2g_ref, ln2b_ref,
        embg_ref, embb_ref,
        cw1_ref, cb1_ref, cw2_ref, cb2_ref,
        # outputs
        logits_ref,
        # scratch
        hid_ref,
        *, scale):
    l = pl.program_id(1)   # layer axis ("arbitrary"); axis 0 is batch ("parallel")

    # Layer step 0: embedding LayerNorm; hidden then stays resident in VMEM scratch.
    @pl.when(l == 0)
    def _():
        hid_ref[...] = _layernorm(emb_ref[...], embg_ref[...], embb_ref[...])

    h = hid_ref[...]                                  # (S, D) f32, VMEM-resident
    hb = h.astype(jnp.bfloat16)

    # --- fused Q/K/V projection: one (S, D) x (D, 3D) bf16 matmul, f32 accum ---
    qkv = jnp.dot(hb, wqkv_ref[...], preferred_element_type=jnp.float32) + bqkv_ref[...]

    bias = maskb_ref[...]                             # (1, S) additive key mask

    # --- self-attention, per-head context kept in vregs (no scratch round-trip) ---
    ctx_heads = []
    for hh in range(NH):                              # tiny static unroll (NH=2)
        c0 = hh * DH
        q_h = qkv[:, c0:c0 + DH]
        k_h = qkv[:, D + c0:D + c0 + DH]
        v_h = qkv[:, 2 * D + c0:2 * D + c0 + DH]
        # NT dot_general: contract last dims of Q and K -> no explicit K transpose.
        s = lax.dot_general(q_h, k_h, (((1,), (1,)), ((), ())),
                            preferred_element_type=jnp.float32) * scale
        s = s + bias
        s = s - jnp.max(s, axis=-1, keepdims=True)
        p = jnp.exp(s)
        p = p * pl.reciprocal(jnp.sum(p, axis=-1, keepdims=True), approx=True)
        ctx_heads.append(jnp.dot(p, v_h, preferred_element_type=jnp.float32))
    ctx = jnp.concatenate(ctx_heads, axis=-1)         # (S, D), lanes = heads, in vregs

    # --- output projection + residual + LayerNorm (fused) ---
    attn = jnp.dot(ctx.astype(jnp.bfloat16), wo_ref[...],
                   preferred_element_type=jnp.float32) + bo_ref[...]
    h1 = _layernorm(attn + h, ln1g_ref[...], ln1b_ref[...])

    # --- feed-forward + residual + LayerNorm (fused) ---
    ff = jnp.dot(h1.astype(jnp.bfloat16), w1_ref[...],
                 preferred_element_type=jnp.float32) + b1_ref[...]
    ff = _gelu(ff)
    ff2 = jnp.dot(ff.astype(jnp.bfloat16), w2_ref[...],
                  preferred_element_type=jnp.float32) + b2_ref[...]
    h2 = _layernorm(ff2 + h1, ln2g_ref[...], ln2b_ref[...])
    hid_ref[...] = h2

    # --- classifier head at the last layer: CLS -> Linear -> ReLU -> Linear ---
    @pl.when(l == pl.num_programs(1) - 1)
    def _():
        cls_row = h2[0:1, :]                                          # (1, D) CLS token
        hcls = jnp.dot(cls_row, cw1_ref[...],
                       preferred_element_type=jnp.float32) + cb1_ref[...]
        hcls = jnp.maximum(hcls, 0.0)
        logits_ref[...] = jnp.dot(hcls, cw2_ref[...],
                                  preferred_element_type=jnp.float32) + cb2_ref[...]


# ----------------------------- parameter init / packing -----------------------------
def init_params(key):
    def nrm(k, shape, scale=0.02):
        return (scale * jax.random.normal(k, shape)).astype(jnp.float32)

    keys = iter(jax.random.split(key, 128))
    p = {
        "word_emb": nrm(next(keys), (VOCAB, D)),
        "pos_emb": nrm(next(keys), (MAX_POS, D)),
        "type_emb": nrm(next(keys), (N_TYPES, D)),
        "emb_ln_g": jnp.ones((D,), jnp.float32),
        "emb_ln_b": jnp.zeros((D,), jnp.float32),
        "layers": [],
    }
    for _ in range(LAYERS):
        layer = {
            "wq": nrm(next(keys), (D, D)), "bq": jnp.zeros((D,), jnp.float32),
            "wk": nrm(next(keys), (D, D)), "bk": jnp.zeros((D,), jnp.float32),
            "wv": nrm(next(keys), (D, D)), "bv": jnp.zeros((D,), jnp.float32),
            "wo": nrm(next(keys), (D, D)), "bo": jnp.zeros((D,), jnp.float32),
            "ln1_g": jnp.ones((D,), jnp.float32), "ln1_b": jnp.zeros((D,), jnp.float32),
            "w1": nrm(next(keys), (D, FF)), "b1": jnp.zeros((FF,), jnp.float32),
            "w2": nrm(next(keys), (FF, D)), "b2": jnp.zeros((D,), jnp.float32),
            "ln2_g": jnp.ones((D,), jnp.float32), "ln2_b": jnp.zeros((D,), jnp.float32),
        }
        p["layers"].append(layer)
    p["cls_w1"] = nrm(next(keys), (D, CLS_H))
    p["cls_b1"] = jnp.zeros((CLS_H,), jnp.float32)
    p["cls_w2"] = nrm(next(keys), (CLS_H, D_OUT))
    p["cls_b2"] = jnp.zeros((D_OUT,), jnp.float32)
    return p


def pack_params(p):
    """Stack per-layer weights on a leading layer axis; matmul weights -> bf16."""
    ls = p["layers"]

    def stk(fn, dtype=jnp.float32):
        return jnp.stack([fn(l) for l in ls], axis=0).astype(dtype)

    return {
        "word_emb": p["word_emb"], "pos_emb": p["pos_emb"], "type_emb": p["type_emb"],
        "emb_ln_g": p["emb_ln_g"].reshape(1, D),
        "emb_ln_b": p["emb_ln_b"].reshape(1, D),
        "wqkv": stk(lambda l: jnp.concatenate([l["wq"], l["wk"], l["wv"]], axis=1),
                    jnp.bfloat16),                                    # (L, D, 3D)
        "bqkv": stk(lambda l: jnp.concatenate(
            [l["bq"], l["bk"], l["bv"]]).reshape(1, 3 * D)),          # (L, 1, 3D)
        "wo": stk(lambda l: l["wo"], jnp.bfloat16),                   # (L, D, D)
        "bo": stk(lambda l: l["bo"].reshape(1, D)),
        "ln1_g": stk(lambda l: l["ln1_g"].reshape(1, D)),
        "ln1_b": stk(lambda l: l["ln1_b"].reshape(1, D)),
        "w1": stk(lambda l: l["w1"], jnp.bfloat16),                   # (L, D, FF)
        "b1": stk(lambda l: l["b1"].reshape(1, FF)),
        "w2": stk(lambda l: l["w2"], jnp.bfloat16),                   # (L, FF, D)
        "b2": stk(lambda l: l["b2"].reshape(1, D)),
        "ln2_g": stk(lambda l: l["ln2_g"].reshape(1, D)),
        "ln2_b": stk(lambda l: l["ln2_b"].reshape(1, D)),
        "cls_w1": p["cls_w1"], "cls_b1": p["cls_b1"].reshape(1, CLS_H),
        "cls_w2": p["cls_w2"], "cls_b2": p["cls_b2"].reshape(1, D_OUT),
    }


# ----------------------------- embedding (shared by kernel path & reference) -----------
def _embed(packed, input_ids):
    Bq, Sq = input_ids.shape
    # TODO(synk): embedding table gather kept in plain JAX (lookup, not a matmul hot path).
    word = jnp.take(packed["word_emb"], input_ids, axis=0)            # (B, S, D)
    pos = packed["pos_emb"][:Sq][None, :, :]
    # TODO(synk): token_type hard-coded to segment 0 (matches all-zero token_type_ids).
    typ = packed["type_emb"][0][None, None, :]
    return word + pos + typ                                           # (B, S, D)


# ----------------------------- forward pass (Pallas) -----------------------------
def bert_classifier_forward(packed, input_ids, attention_mask):
    Bq, Sq = input_ids.shape

    # Additive key mask: 0 where keep, -1e9 where pad (computed once, outside kernel).
    mask_bias = ((attention_mask.astype(jnp.float32) - 1.0) * 1e9).reshape(Bq, 1, Sq)
    emb = _embed(packed, input_ids)                                   # (B, S, D)

    lmap = lambda b, l: (l, 0, 0)     # per-layer stacked weights
    bmap = lambda b, l: (b, 0, 0)     # per-example blocks
    cmap = lambda b, l: (0, 0)        # layer/batch-invariant arrays

    logits = pl.pallas_call(
        functools.partial(_fused_bert_kernel, scale=1.0 / (DH ** 0.5)),
        out_shape=jax.ShapeDtypeStruct((Bq, 1, D_OUT), jnp.float32),
        grid=(Bq, LAYERS),
        in_specs=[
            pl.BlockSpec((None, Sq, D), bmap),       # emb
            pl.BlockSpec((None, 1, Sq), bmap),       # mask_bias
            pl.BlockSpec((None, D, 3 * D), lmap),    # wqkv (bf16)
            pl.BlockSpec((None, 1, 3 * D), lmap),    # bqkv
            pl.BlockSpec((None, D, D), lmap),        # wo (bf16)
            pl.BlockSpec((None, 1, D), lmap),        # bo
            pl.BlockSpec((None, 1, D), lmap),        # ln1_g
            pl.BlockSpec((None, 1, D), lmap),        # ln1_b
            pl.BlockSpec((None, D, FF), lmap),       # w1 (bf16)
            pl.BlockSpec((None, 1, FF), lmap),       # b1
            pl.BlockSpec((None, FF, D), lmap),       # w2 (bf16)
            pl.BlockSpec((None, 1, D), lmap),        # b2
            pl.BlockSpec((None, 1, D), lmap),        # ln2_g
            pl.BlockSpec((None, 1, D), lmap),        # ln2_b
            pl.BlockSpec((1, D), cmap),              # emb_ln_g
            pl.BlockSpec((1, D), cmap),              # emb_ln_b
            pl.BlockSpec((D, CLS_H), cmap),          # cls_w1
            pl.BlockSpec((1, CLS_H), cmap),          # cls_b1
            pl.BlockSpec((CLS_H, D_OUT), cmap),      # cls_w2
            pl.BlockSpec((1, D_OUT), cmap),          # cls_b2
        ],
        out_specs=pl.BlockSpec((None, 1, D_OUT), bmap),   # logits, written at last layer
        scratch_shapes=[pltpu.VMEM((Sq, D), jnp.float32)],  # resident hidden state
        compiler_params=pltpu.CompilerParams(
            # batch axis can be split across TensorCores (v7x); layer axis carries state
            dimension_semantics=("parallel", "arbitrary")),
    )(emb, mask_bias,
      packed["wqkv"], packed["bqkv"], packed["wo"], packed["bo"],
      packed["ln1_g"], packed["ln1_b"],
      packed["w1"], packed["b1"], packed["w2"], packed["b2"],
      packed["ln2_g"], packed["ln2_b"],
      packed["emb_ln_g"], packed["emb_ln_b"],
      packed["cls_w1"], packed["cls_b1"], packed["cls_w2"], packed["cls_b2"])
    return logits.reshape(Bq, D_OUT)


# ----------------------------- pure-JAX reference (mirrors kernel numerics) -------------
def bert_classifier_reference(packed, input_ids, attention_mask):
    Bq, Sq = input_ids.shape
    hp = lax.Precision.HIGHEST
    mask_bias = (attention_mask.astype(jnp.float32) - 1.0) * 1e9      # (B, S)
    h = _layernorm(_embed(packed, input_ids), packed["emb_ln_g"], packed["emb_ln_b"])
    scale = 1.0 / (DH ** 0.5)
    for li in range(LAYERS):
        hb = h.astype(jnp.bfloat16)
        qkv = jnp.einsum("bsd,de->bse", hb, packed["wqkv"][li],
                         preferred_element_type=jnp.float32) + packed["bqkv"][li]
        q = qkv[..., :D].reshape(Bq, Sq, NH, DH)
        k = qkv[..., D:2 * D].reshape(Bq, Sq, NH, DH)
        v = qkv[..., 2 * D:].reshape(Bq, Sq, NH, DH)
        s = jnp.einsum("bqhd,bkhd->bhqk", q, k, precision=hp) * scale
        s = s + mask_bias[:, None, None, :]
        s = s - jnp.max(s, axis=-1, keepdims=True)
        p = jnp.exp(s)
        p = p / jnp.sum(p, axis=-1, keepdims=True)
        ctx = jnp.einsum("bhqk,bkhd->bqhd", p, v, precision=hp).reshape(Bq, Sq, D)
        attn = jnp.einsum("bsd,de->bse", ctx.astype(jnp.bfloat16), packed["wo"][li],
                          preferred_element_type=jnp.float32) + packed["bo"][li]
        h1 = _layernorm(attn + h, packed["ln1_g"][li], packed["ln1_b"][li])
        ff = jnp.einsum("bsd,df->bsf", h1.astype(jnp.bfloat16), packed["w1"][li],
                        preferred_element_type=jnp.float32) + packed["b1"][li]
        ff = _gelu(ff)
        ff2 = jnp.einsum("bsf,fd->bsd", ff.astype(jnp.bfloat16), packed["w2"][li],
                         preferred_element_type=jnp.float32) + packed["b2"][li]
        h = _layernorm(ff2 + h1, packed["ln2_g"][li], packed["ln2_b"][li])
    cls = h[:, 0, :]                                                  # (B, D)
    hcls = jnp.maximum(jnp.dot(cls, packed["cls_w1"], precision=hp) + packed["cls_b1"], 0.0)
    return jnp.dot(hcls, packed["cls_w2"], precision=hp) + packed["cls_b2"]


# ----------------------------- main -----------------------------
if __name__ == "__main__":
    key = jax.random.PRNGKey(0)
    k_param, k_ids = jax.random.split(key)

    params = init_params(k_param)
    packed = pack_params(params)

    input_ids = jax.random.randint(k_ids, (B, S), 0, VOCAB, dtype=jnp.int32)
    input_ids = input_ids.at[:, 0].set(2)  # CLS-like token at position 0
    attention_mask = jnp.ones((B, S), dtype=jnp.int32)
    attention_mask = attention_mask.at[1, S - 2:].set(0)  # padding in example 1

    logits = bert_classifier_forward(packed, input_ids, attention_mask)
    logits = jax.block_until_ready(logits)

    assert logits.shape == (B, D_OUT), logits.shape
    assert bool(jnp.all(jnp.isfinite(logits)))

    ref = bert_classifier_reference(packed, input_ids, attention_mask)
    err = float(jnp.max(jnp.abs(logits - ref)))
    assert err < 3e-3, f"max |kernel - reference| = {err}"

    print("KERNEL_OK")
</pallas_src>

<mosaic_0001>
module attributes {stable_mosaic.version = 11 : i64} {
  func.func @_fused_bert_kernel(%arg0: i32, %arg1: i32, %arg2: memref<1x8x128xf32, #tpu.memory_space<vmem>>, %arg3: memref<1x1x8xf32, #tpu.memory_space<vmem>>, %arg4: memref<1x128x384xbf16, #tpu.memory_space<vmem>>, %arg5: memref<1x1x384xf32, #tpu.memory_space<vmem>>, %arg6: memref<1x128x128xbf16, #tpu.memory_space<vmem>>, %arg7: memref<1x1x128xf32, #tpu.memory_space<vmem>>, %arg8: memref<1x1x128xf32, #tpu.memory_space<vmem>>, %arg9: memref<1x1x128xf32, #tpu.memory_space<vmem>>, %arg10: memref<1x128x256xbf16, #tpu.memory_space<vmem>>, %arg11: memref<1x1x256xf32, #tpu.memory_space<vmem>>, %arg12: memref<1x256x128xbf16, #tpu.memory_space<vmem>>, %arg13: memref<1x1x128xf32, #tpu.memory_space<vmem>>, %arg14: memref<1x1x128xf32, #tpu.memory_space<vmem>>, %arg15: memref<1x1x128xf32, #tpu.memory_space<vmem>>, %arg16: memref<1x128xf32, #tpu.memory_space<vmem>>, %arg17: memref<1x128xf32, #tpu.memory_space<vmem>>, %arg18: memref<128x32xf32, #tpu.memory_space<vmem>>, %arg19: memref<1x32xf32, #tpu.memory_space<vmem>>, %arg20: memref<32x5xf32, #tpu.memory_space<vmem>>, %arg21: memref<1x5xf32, #tpu.memory_space<vmem>>, %arg22: memref<1x1x5xf32, #tpu.memory_space<vmem>>, %arg23: memref<8x128xf32, #tpu.memory_space<vmem>>) attributes {dimension_semantics = [#tpu.dimension_semantics<parallel>, #tpu.dimension_semantics<arbitrary>], iteration_bounds = array<i64: 2, 2>, scalar_prefetch = 0 : i64, scratch_operands = 1 : i64, tpu.core_type = #tpu.core_type<tc>, window_params = [{transform_indices = @transform_0, window_bounds = array<i64: 1, 8, 128>}, {transform_indices = @transform_1, window_bounds = array<i64: 1, 1, 8>}, {transform_indices = @transform_2, window_bounds = array<i64: 1, 128, 384>}, {transform_indices = @transform_3, window_bounds = array<i64: 1, 1, 384>}, {transform_indices = @transform_4, window_bounds = array<i64: 1, 128, 128>}, {transform_indices = @transform_5, window_bounds = array<i64: 1, 1, 128>}, {transform_indices = @transform_6, window_bounds = array<i64: 1, 1, 128>}, {transform_indices = @transform_7, window_bounds = array<i64: 1, 1, 128>}, {transform_indices = @transform_8, window_bounds = array<i64: 1, 128, 256>}, {transform_indices = @transform_9, window_bounds = array<i64: 1, 1, 256>}, {transform_indices = @transform_10, window_bounds = array<i64: 1, 256, 128>}, {transform_indices = @transform_11, window_bounds = array<i64: 1, 1, 128>}, {transform_indices = @transform_12, window_bounds = array<i64: 1, 1, 128>}, {transform_indices = @transform_13, window_bounds = array<i64: 1, 1, 128>}, {pipeline_mode = #tpu.pipeline_mode<synchronous>, transform_indices = @transform_14, window_bounds = array<i64: 1, 128>}, {pipeline_mode = #tpu.pipeline_mode<synchronous>, transform_indices = @transform_15, window_bounds = array<i64: 1, 128>}, {pipeline_mode = #tpu.pipeline_mode<synchronous>, transform_indices = @transform_16, window_bounds = array<i64: 128, 32>}, {pipeline_mode = #tpu.pipeline_mode<synchronous>, transform_indices = @transform_17, window_bounds = array<i64: 1, 32>}, {pipeline_mode = #tpu.pipeline_mode<synchronous>, transform_indices = @transform_18, window_bounds = array<i64: 32, 5>}, {pipeline_mode = #tpu.pipeline_mode<synchronous>, transform_indices = @transform_19, window_bounds = array<i64: 1, 5>}, {transform_indices = @transform_20, window_bounds = array<i64: 1, 1, 5>}]} {
    %c0_i32 = arith.constant 0 : i32
    %0 = arith.cmpi eq, %arg1, %c0_i32 : i32
    %1 = arith.extui %0 : i1 to i32
    %c0_i32_0 = arith.constant 0 : i32
    %2 = arith.cmpi ne, %1, %c0_i32_0 : i32
    scf.if %2 {
      %c0_71 = arith.constant 0 : index
      %c0_72 = arith.constant 0 : index
      %c0_73 = arith.constant 0 : index
      %152 = vector.load %arg2[%c0_71, %c0_72, %c0_73] : memref<1x8x128xf32, #tpu.memory_space<vmem>>, vector<1x8x128xf32>
      %153 = vector.shape_cast %152 : vector<1x8x128xf32> to vector<8x128xf32>
      %c0_74 = arith.constant 0 : index
      %c0_75 = arith.constant 0 : index
      %154 = vector.load %arg16[%c0_74, %c0_75] : memref<1x128xf32, #tpu.memory_space<vmem>>, vector<1x128xf32>
      %c0_76 = arith.constant 0 : index
      %c0_77 = arith.constant 0 : index
      %155 = vector.load %arg17[%c0_76, %c0_77] : memref<1x128xf32, #tpu.memory_space<vmem>>, vector<1x128xf32>
      %cst_78 = arith.constant dense<0.000000e+00> : vector<8xf32>
      %156 = vector.multi_reduction <add>, %153, %cst_78 [1] : vector<8x128xf32> to vector<8xf32>
      %157 = vector.shape_cast %156 : vector<8xf32> to vector<8x1xf32>
      %cst_79 = arith.constant 1.280000e+02 : f32
      %158 = vector.broadcast %cst_79 : f32 to vector<8x1xf32>
      %159 = arith.divf %157, %158 : vector<8x1xf32>
      %160 = vector.broadcast %159 : vector<8x1xf32> to vector<8x128xf32>
      %161 = arith.subf %153, %160 : vector<8x128xf32>
      %162 = vector.broadcast %159 : vector<8x1xf32> to vector<8x128xf32>
      %163 = arith.subf %153, %162 : vector<8x128xf32>
      %164 = arith.mulf %161, %163 : vector<8x128xf32>
      %cst_80 = arith.constant dense<0.000000e+00> : vector<8xf32>
      %165 = vector.multi_reduction <add>, %164, %cst_80 [1] : vector<8x128xf32> to vector<8xf32>
      %166 = vector.shape_cast %165 : vector<8xf32> to vector<8x1xf32>
      %cst_81 = arith.constant 1.280000e+02 : f32
      %167 = vector.broadcast %cst_81 : f32 to vector<8x1xf32>
      %168 = arith.divf %166, %167 : vector<8x1xf32>
      %169 = vector.broadcast %159 : vector<8x1xf32> to vector<8x128xf32>
      %170 = arith.subf %153, %169 : vector<8x128xf32>
      %cst_82 = arith.constant 9.99999996E-13 : f32
      %171 = vector.broadcast %cst_82 : f32 to vector<8x1xf32>
      %172 = arith.addf %168, %171 : vector<8x1xf32>
      %173 = math.rsqrt %172 : vector<8x1xf32>
      %174 = vector.broadcast %173 : vector<8x1xf32> to vector<8x128xf32>
      %175 = arith.mulf %170, %174 : vector<8x128xf32>
      %176 = vector.broadcast %154 : vector<1x128xf32> to vector<8x128xf32>
      %177 = arith.mulf %175, %176 : vector<8x128xf32>
      %178 = vector.broadcast %155 : vector<1x128xf32> to vector<8x128xf32>
      %179 = arith.addf %177, %178 : vector<8x128xf32>
      %c0_83 = arith.constant 0 : index
      %c0_84 = arith.constant 0 : index
      %180 = vector.load %arg23[%c0_83, %c0_84] : memref<8x128xf32, #tpu.memory_space<vmem>>, vector<8x128xf32>
      tpu.vector_store %arg23[%c0_83, %c0_84], %179 {strides = array<i32>} : memref<8x128xf32, #tpu.memory_space<vmem>>, vector<8x128xf32>,
    } else {
    }
    %c0 = arith.constant 0 : index
    %c0_1 = arith.constant 0 : index
    %3 = vector.load %arg23[%c0, %c0_1] : memref<8x128xf32, #tpu.memory_space<vmem>>, vector<8x128xf32>
    %4 = arith.truncf %3 : vector<8x128xf32> to vector<8x128xbf16>
    %c0_2 = arith.constant 0 : index
    %c0_3 = arith.constant 0 : index
    %c0_4 = arith.constant 0 : index
    %5 = vector.load %arg4[%c0_2, %c0_3, %c0_4] : memref<1x128x384xbf16, #tpu.memory_space<vmem>>, vector<1x128x384xbf16>
    %6 = vector.shape_cast %5 : vector<1x128x384xbf16> to vector<128x384xbf16>
    %cst = arith.constant dense<0.000000e+00> : vector<8x384xf32>
    %7 = tpu.matmul %4, %6, %cst {dimension_numbers = #tpu.dot_dimension_numbers<[1], [0], [0], [1], [0, 0, 1, 1], [], []>} : vector<8x128xbf16>, vector<128x384xbf16>, vector<8x384xf32> -> vector<8x384xf32>
    %c0_5 = arith.constant 0 : index
    %c0_6 = arith.constant 0 : index
    %c0_7 = arith.constant 0 : index
    %8 = vector.load %arg5[%c0_5, %c0_6, %c0_7] : memref<1x1x384xf32, #tpu.memory_space<vmem>>, vector<1x1x384xf32>
    %9 = vector.shape_cast %8 : vector<1x1x384xf32> to vector<1x384xf32>
    %10 = vector.broadcast %9 : vector<1x384xf32> to vector<8x384xf32>
    %11 = arith.addf %7, %10 : vector<8x384xf32>
    %c0_8 = arith.constant 0 : index
    %c0_9 = arith.constant 0 : index
    %c0_10 = arith.constant 0 : index
    %12 = vector.load %arg3[%c0_8, %c0_9, %c0_10] : memref<1x1x8xf32, #tpu.memory_space<vmem>>, vector<1x1x8xf32>
    %13 = vector.shape_cast %12 : vector<1x1x8xf32> to vector<1x8xf32>
    %14 = vector.extract_strided_slice %11 {offsets = [0, 0], sizes = [8, 64], strides = [1, 1]} : vector<8x384xf32> to vector<8x64xf32>
    %15 = vector.extract_strided_slice %11 {offsets = [0, 128], sizes = [8, 64], strides = [1, 1]} : vector<8x384xf32> to vector<8x64xf32>
    %16 = vector.extract_strided_slice %11 {offsets = [0, 256], sizes = [8, 64], strides = [1, 1]} : vector<8x384xf32> to vector<8x64xf32>
    %cst_11 = arith.constant dense<0.000000e+00> : vector<8x8xf32>
    %17 = tpu.matmul %14, %15, %cst_11 {dimension_numbers = #tpu.dot_dimension_numbers<[1], [1], [0], [0], [0, 0, 1, 0], [], []>} : vector<8x64xf32>, vector<8x64xf32>, vector<8x8xf32> -> vector<8x8xf32>
    %cst_12 = arith.constant 1.250000e-01 : f32
    %18 = vector.broadcast %cst_12 : f32 to vector<8x8xf32>
    %19 = arith.mulf %17, %18 : vector<8x8xf32>
    %20 = vector.broadcast %13 : vector<1x8xf32> to vector<8x8xf32>
    %21 = arith.addf %19, %20 : vector<8x8xf32>
    %cst_13 = arith.constant dense<0xFF800000> : vector<8xf32>
    %22 = vector.multi_reduction <maximumf>, %21, %cst_13 [1] : vector<8x8xf32> to vector<8xf32>
    %23 = vector.shape_cast %22 : vector<8xf32> to vector<8x1xf32>
    %24 = vector.broadcast %23 : vector<8x1xf32> to vector<8x8xf32>
    %25 = arith.subf %21, %24 : vector<8x8xf32>
    %26 = math.exp %25 : vector<8x8xf32>
    %cst_14 = arith.constant dense<0.000000e+00> : vector<8xf32>
    %27 = vector.multi_reduction <add>, %26, %cst_14 [1] : vector<8x8xf32> to vector<8xf32>
    %28 = vector.shape_cast %27 : vector<8xf32> to vector<8x1xf32>
    %29 = tpu.reciprocal %28 {approx = true} : vector<8x1xf32> -> vector<8x1xf32>
    %30 = vector.broadcast %29 : vector<8x1xf32> to vector<8x8xf32>
    %31 = arith.mulf %26, %30 : vector<8x8xf32>
    %cst_15 = arith.constant dense<0.000000e+00> : vector<8x64xf32>
    %32 = tpu.matmul %31, %16, %cst_15 {dimension_numbers = #tpu.dot_dimension_numbers<[1], [0], [0], [1], [0, 0, 1, 1], [], []>} : vector<8x8xf32>, vector<8x64xf32>, vector<8x64xf32> -> vector<8x64xf32>
    %33 = vector.extract_strided_slice %11 {offsets = [0, 64], sizes = [8, 64], strides = [1, 1]} : vector<8x384xf32> to vector<8x64xf32>
    %34 = vector.extract_strided_slice %11 {offsets = [0, 192], sizes = [8, 64], strides = [1, 1]} : vector<8x384xf32> to vector<8x64xf32>
    %35 = vector.extract_strided_slice %11 {offsets = [0, 320], sizes = [8, 64], strides = [1, 1]} : vector<8x384xf32> to vector<8x64xf32>
    %cst_16 = arith.constant dense<0.000000e+00> : vector<8x8xf32>
    %36 = tpu.matmul %33, %34, %cst_16 {dimension_numbers = #tpu.dot_dimension_numbers<[1], [1], [0], [0], [0, 0, 1, 0], [], []>} : vector<8x64xf32>, vector<8x64xf32>, vector<8x8xf32> -> vector<8x8xf32>
    %cst_17 = arith.constant 1.250000e-01 : f32
    %37 = vector.broadcast %cst_17 : f32 to vector<8x8xf32>
    %38 = arith.mulf %36, %37 : vector<8x8xf32>
    %39 = vector.broadcast %13 : vector<1x8xf32> to vector<8x8xf32>
    %40 = arith.addf %38, %39 : vector<8x8xf32>
    %cst_18 = arith.constant dense<0xFF800000> : vector<8xf32>
    %41 = vector.multi_reduction <maximumf>, %40, %cst_18 [1] : vector<8x8xf32> to vector<8xf32>
    %42 = vector.shape_cast %41 : vector<8xf32> to vector<8x1xf32>
    %43 = vector.broadcast %42 : vector<8x1xf32> to vector<8x8xf32>
    %44 = arith.subf %40, %43 : vector<8x8xf32>
    %45 = math.exp %44 : vector<8x8xf32>
    %cst_19 = arith.constant dense<0.000000e+00> : vector<8xf32>
    %46 = vector.multi_reduction <add>, %45, %cst_19 [1] : vector<8x8xf32> to vector<8xf32>
    %47 = vector.shape_cast %46 : vector<8xf32> to vector<8x1xf32>
    %48 = tpu.reciprocal %47 {approx = true} : vector<8x1xf32> -> vector<8x1xf32>
    %49 = vector.broadcast %48 : vector<8x1xf32> to vector<8x8xf32>
    %50 = arith.mulf %45, %49 : vector<8x8xf32>
    %cst_20 = arith.constant dense<0.000000e+00> : vector<8x64xf32>
    %51 = tpu.matmul %50, %35, %cst_20 {dimension_numbers = #tpu.dot_dimension_numbers<[1], [0], [0], [1], [0, 0, 1, 1], [], []>} : vector<8x8xf32>, vector<8x64xf32>, vector<8x64xf32> -> vector<8x64xf32>
    %52 = tpu.concatenate %32, %51 in 1 : vector<8x64xf32>, vector<8x64xf32> -> vector<8x128xf32>
    %53 = arith.truncf %52 : vector<8x128xf32> to vector<8x128xbf16>
    %c0_21 = arith.constant 0 : index
    %c0_22 = arith.constant 0 : index
    %c0_23 = arith.constant 0 : index
    %54 = vector.load %arg6[%c0_21, %c0_22, %c0_23] : memref<1x128x128xbf16, #tpu.memory_space<vmem>>, vector<1x128x128xbf16>
    %55 = vector.shape_cast %54 : vector<1x128x128xbf16> to vector<128x128xbf16>
    %cst_24 = arith.constant dense<0.000000e+00> : vector<8x128xf32>
    %56 = tpu.matmul %53, %55, %cst_24 {dimension_numbers = #tpu.dot_dimension_numbers<[1], [0], [0], [1], [0, 0, 1, 1], [], []>} : vector<8x128xbf16>, vector<128x128xbf16>, vector<8x128xf32> -> vector<8x128xf32>
    %c0_25 = arith.constant 0 : index
    %c0_26 = arith.constant 0 : index
    %c0_27 = arith.constant 0 : index
    %57 = vector.load %arg7[%c0_25, %c0_26, %c0_27] : memref<1x1x128xf32, #tpu.memory_space<vmem>>, vector<1x1x128xf32>
    %58 = vector.shape_cast %57 : vector<1x1x128xf32> to vector<1x128xf32>
    %59 = vector.broadcast %58 : vector<1x128xf32> to vector<8x128xf32>
    %60 = arith.addf %56, %59 : vector<8x128xf32>
    %61 = arith.addf %60, %3 : vector<8x128xf32>
    %c0_28 = arith.constant 0 : index
    %c0_29 = arith.constant 0 : index
    %c0_30 = arith.constant 0 : index
    %62 = vector.load %arg8[%c0_28, %c0_29, %c0_30] : memref<1x1x128xf32, #tpu.memory_space<vmem>>, vector<1x1x128xf32>
    %63 = vector.shape_cast %62 : vector<1x1x128xf32> to vector<1x128xf32>
    %c0_31 = arith.constant 0 : index
    %c0_32 = arith.constant 0 : index
    %c0_33 = arith.constant 0 : index
    %64 = vector.load %arg9[%c0_31, %c0_32, %c0_33] : memref<1x1x128xf32, #tpu.memory_space<vmem>>, vector<1x1x128xf32>
    %65 = vector.shape_cast %64 : vector<1x1x128xf32> to vector<1x128xf32>
    %cst_34 = arith.constant dense<0.000000e+00> : vector<8xf32>
    %66 = vector.multi_reduction <add>, %61, %cst_34 [1] : vector<8x128xf32> to vector<8xf32>
    %67 = vector.shape_cast %66 : vector<8xf32> to vector<8x1xf32>
    %cst_35 = arith.constant 1.280000e+02 : f32
    %68 = vector.broadcast %cst_35 : f32 to vector<8x1xf32>
    %69 = arith.divf %67, %68 : vector<8x1xf32>
    %70 = vector.broadcast %69 : vector<8x1xf32> to vector<8x128xf32>
    %71 = arith.subf %61, %70 : vector<8x128xf32>
    %72 = vector.broadcast %69 : vector<8x1xf32> to vector<8x128xf32>
    %73 = arith.subf %61, %72 : vector<8x128xf32>
    %74 = arith.mulf %71, %73 : vector<8x128xf32>
    %cst_36 = arith.constant dense<0.000000e+00> : vector<8xf32>
    %75 = vector.multi_reduction <add>, %74, %cst_36 [1] : vector<8x128xf32> to vector<8xf32>
    %76 = vector.shape_cast %75 : vector<8xf32> to vector<8x1xf32>
    %cst_37 = arith.constant 1.280000e+02 : f32
    %77 = vector.broadcast %cst_37 : f32 to vector<8x1xf32>
    %78 = arith.divf %76, %77 : vector<8x1xf32>
    %79 = vector.broadcast %69 : vector<8x1xf32> to vector<8x128xf32>
    %80 = arith.subf %61, %79 : vector<8x128xf32>
    %cst_38 = arith.constant 9.99999996E-13 : f32
    %81 = vector.broadcast %cst_38 : f32 to vector<8x1xf32>
    %82 = arith.addf %78, %81 : vector<8x1xf32>
    %83 = math.rsqrt %82 : vector<8x1xf32>
    %84 = vector.broadcast %83 : vector<8x1xf32> to vector<8x128xf32>
    %85 = arith.mulf %80, %84 : vector<8x128xf32>
    %86 = vector.broadcast %63 : vector<1x128xf32> to vector<8x128xf32>
    %87 = arith.mulf %85, %86 : vector<8x128xf32>
    %88 = vector.broadcast %65 : vector<1x128xf32> to vector<8x128xf32>
    %89 = arith.addf %87, %88 : vector<8x128xf32>
    %90 = arith.truncf %89 : vector<8x128xf32> to vector<8x128xbf16>
    %c0_39 = arith.constant 0 : index
    %c0_40 = arith.constant 0 : index
    %c0_41 = arith.constant 0 : index
    %91 = vector.load %arg10[%c0_39, %c0_40, %c0_41] : memref<1x128x256xbf16, #tpu.memory_space<vmem>>, vector<1x128x256xbf16>
    %92 = vector.shape_cast %91 : vector<1x128x256xbf16> to vector<128x256xbf16>
    %cst_42 = arith.constant dense<0.000000e+00> : vector<8x256xf32>
    %93 = tpu.matmul %90, %92, %cst_42 {dimension_numbers = #tpu.dot_dimension_numbers<[1], [0], [0], [1], [0, 0, 1, 1], [], []>} : vector<8x128xbf16>, vector<128x256xbf16>, vector<8x256xf32> -> vector<8x256xf32>
    %c0_43 = arith.constant 0 : index
    %c0_44 = arith.constant 0 : index
    %c0_45 = arith.constant 0 : index
    %94 = vector.load %arg11[%c0_43, %c0_44, %c0_45] : memref<1x1x256xf32, #tpu.memory_space<vmem>>, vector<1x1x256xf32>
    %95 = vector.shape_cast %94 : vector<1x1x256xf32> to vector<1x256xf32>
    %96 = vector.broadcast %95 : vector<1x256xf32> to vector<8x256xf32>
    %97 = arith.addf %93, %96 : vector<8x256xf32>
    %cst_46 = arith.constant 5.000000e-01 : f32
    %98 = vector.broadcast %cst_46 : f32 to vector<8x256xf32>
    %99 = arith.mulf %98, %97 : vector<8x256xf32>
    %cst_47 = arith.constant 4.471500e-02 : f32
    %100 = vector.broadcast %cst_47 : f32 to vector<8x256xf32>
    %101 = arith.mulf %100, %97 : vector<8x256xf32>
    %102 = arith.mulf %101, %97 : vector<8x256xf32>
    %103 = arith.mulf %102, %97 : vector<8x256xf32>
    %104 = arith.addf %97, %103 : vector<8x256xf32>
    %cst_48 = arith.constant 0.797884583 : f32
    %105 = vector.broadcast %cst_48 : f32 to vector<8x256xf32>
    %106 = arith.mulf %105, %104 : vector<8x256xf32>
    %107 = math.tanh %106 : vector<8x256xf32>
    %cst_49 = arith.constant 1.000000e+00 : f32
    %108 = vector.broadcast %cst_49 : f32 to vector<8x256xf32>
    %109 = arith.addf %108, %107 : vector<8x256xf32>
    %110 = arith.mulf %99, %109 : vector<8x256xf32>
    %111 = arith.truncf %110 : vector<8x256xf32> to vector<8x256xbf16>
    %c0_50 = arith.constant 0 : index
    %c0_51 = arith.constant 0 : index
    %c0_52 = arith.constant 0 : index
    %112 = vector.load %arg12[%c0_50, %c0_51, %c0_52] : memref<1x256x128xbf16, #tpu.memory_space<vmem>>, vector<1x256x128xbf16>
    %113 = vector.shape_cast %112 : vector<1x256x128xbf16> to vector<256x128xbf16>
    %cst_53 = arith.constant dense<0.000000e+00> : vector<8x128xf32>
    %114 = tpu.matmul %111, %113, %cst_53 {dimension_numbers = #tpu.dot_dimension_numbers<[1], [0], [0], [1], [0, 0, 1, 1], [], []>} : vector<8x256xbf16>, vector<256x128xbf16>, vector<8x128xf32> -> vector<8x128xf32>
    %c0_54 = arith.constant 0 : index
    %c0_55 = arith.constant 0 : index
    %c0_56 = arith.constant 0 : index
    %115 = vector.load %arg13[%c0_54, %c0_55, %c0_56] : memref<1x1x128xf32, #tpu.memory_space<vmem>>, vector<1x1x128xf32>
    %116 = vector.shape_cast %115 : vector<1x1x128xf32> to vector<1x128xf32>
    %117 = vector.broadcast %116 : vector<1x128xf32> to vector<8x128xf32>
    %118 = arith.addf %114, %117 : vector<8x128xf32>
    %119 = arith.addf %118, %89 : vector<8x128xf32>
    %c0_57 = arith.constant 0 : index
    %c0_58 = arith.constant 0 : index
    %c0_59 = arith.constant 0 : index
    %120 = vector.load %arg14[%c0_57, %c0_58, %c0_59] : memref<1x1x128xf32, #tpu.memory_space<vmem>>, vector<1x1x128xf32>
    %121 = vector.shape_cast %120 : vector<1x1x128xf32> to vector<1x128xf32>
    %c0_60 = arith.constant 0 : index
    %c0_61 = arith.constant 0 : index
    %c0_62 = arith.constant 0 : index
    %122 = vector.load %arg15[%c0_60, %c0_61, %c0_62] : memref<1x1x128xf32, #tpu.memory_space<vmem>>, vector<1x1x128xf32>
    %123 = vector.shape_cast %122 : vector<1x1x128xf32> to vector<1x128xf32>
    %cst_63 = arith.constant dense<0.000000e+00> : vector<8xf32>
    %124 = vector.multi_reduction <add>, %119, %cst_63 [1] : vector<8x128xf32> to vector<8xf32>
    %125 = vector.shape_cast %124 : vector<8xf32> to vector<8x1xf32>
    %cst_64 = arith.constant 1.280000e+02 : f32
    %126 = vector.broadcast %cst_64 : f32 to vector<8x1xf32>
    %127 = arith.divf %125, %126 : vector<8x1xf32>
    %128 = vector.broadcast %127 : vector<8x1xf32> to vector<8x128xf32>
    %129 = arith.subf %119, %128 : vector<8x128xf32>
    %130 = vector.broadcast %127 : vector<8x1xf32> to vector<8x128xf32>
    %131 = arith.subf %119, %130 : vector<8x128xf32>
    %132 = arith.mulf %129, %131 : vector<8x128xf32>
    %cst_65 = arith.constant dense<0.000000e+00> : vector<8xf32>
    %133 = vector.multi_reduction <add>, %132, %cst_65 [1] : vector<8x128xf32> to vector<8xf32>
    %134 = vector.shape_cast %133 : vector<8xf32> to vector<8x1xf32>
    %cst_66 = arith.constant 1.280000e+02 : f32
    %135 = vector.broadcast %cst_66 : f32 to vector<8x1xf32>
    %136 = arith.divf %134, %135 : vector<8x1xf32>
    %137 = vector.broadcast %127 : vector<8x1xf32> to vector<8x128xf32>
    %138 = arith.subf %119, %137 : vector<8x128xf32>
    %cst_67 = arith.constant 9.99999996E-13 : f32
    %139 = vector.broadcast %cst_67 : f32 to vector<8x1xf32>
    %140 = arith.addf %136, %139 : vector<8x1xf32>
    %141 = math.rsqrt %140 : vector<8x1xf32>
    %142 = vector.broadcast %141 : vector<8x1xf32> to vector<8x128xf32>
    %143 = arith.mulf %138, %142 : vector<8x128xf32>
    %144 = vector.broadcast %121 : vector<1x128xf32> to vector<8x128xf32>
    %145 = arith.mulf %143, %144 : vector<8x128xf32>
    %146 = vector.broadcast %123 : vector<1x128xf32> to vector<8x128xf32>
    %147 = arith.addf %145, %146 : vector<8x128xf32>
    %c0_68 = arith.constant 0 : index
    %c0_69 = arith.constant 0 : index
    %148 = vector.load %arg23[%c0_68, %c0_69] : memref<8x128xf32, #tpu.memory_space<vmem>>, vector<8x128xf32>
    tpu.vector_store %arg23[%c0_68, %c0_69], %147 {strides = array<i32>} : memref<8x128xf32, #tpu.memory_space<vmem>>, vector<8x128xf32>,
    %c1_i32 = arith.constant 1 : i32
    %149 = arith.cmpi eq, %arg1, %c1_i32 : i32
    %150 = arith.extui %149 : i1 to i32
    %c0_i32_70 = arith.constant 0 : i32
    %151 = arith.cmpi ne, %150, %c0_i32_70 : i32
    scf.if %151 {
      %152 = vector.extract_strided_slice %147 {offsets = [0, 0], sizes = [1, 128], strides = [1, 1]} : vector<8x128xf32> to vector<1x128xf32>
      %c0_71 = arith.constant 0 : index
      %c0_72 = arith.constant 0 : index
      %153 = vector.load %arg18[%c0_71, %c0_72] : memref<128x32xf32, #tpu.memory_space<vmem>>, vector<128x32xf32>
      %cst_73 = arith.constant dense<0.000000e+00> : vector<1x32xf32>
      %154 = tpu.matmul %152, %153, %cst_73 {dimension_numbers = #tpu.dot_dimension_numbers<[1], [0], [0], [1], [0, 0, 1, 1], [], []>} : vector<1x128xf32>, vector<128x32xf32>, vector<1x32xf32> -> vector<1x32xf32>
      %c0_74 = arith.constant 0 : index
      %c0_75 = arith.constant 0 : index
      %155 = vector.load %arg19[%c0_74, %c0_75] : memref<1x32xf32, #tpu.memory_space<vmem>>, vector<1x32xf32>
      %156 = arith.addf %154, %155 : vector<1x32xf32>
      %cst_76 = arith.constant 0.000000e+00 : f32
      %157 = vector.broadcast %cst_76 : f32 to vector<1x32xf32>
      %158 = arith.maximumf %156, %157 : vector<1x32xf32>
      %c0_77 = arith.constant 0 : index
      %c0_78 = arith.constant 0 : index
      %159 = vector.load %arg20[%c0_77, %c0_78] : memref<32x5xf32, #tpu.memory_space<vmem>>, vector<32x5xf32>
      %cst_79 = arith.constant dense<0.000000e+00> : vector<1x5xf32>
      %160 = tpu.matmul %158, %159, %cst_79 {dimension_numbers = #tpu.dot_dimension_numbers<[1], [0], [0], [1], [0, 0, 1, 1], [], []>} : vector<1x32xf32>, vector<32x5xf32>, vector<1x5xf32> -> vector<1x5xf32>
      %c0_80 = arith.constant 0 : index
      %c0_81 = arith.constant 0 : index
      %161 = vector.load %arg21[%c0_80, %c0_81] : memref<1x5xf32, #tpu.memory_space<vmem>>, vector<1x5xf32>
      %162 = arith.addf %160, %161 : vector<1x5xf32>
      %c0_82 = arith.constant 0 : index
      %c0_83 = arith.constant 0 : index
      %c0_84 = arith.constant 0 : index
      %163 = vector.load %arg22[%c0_82, %c0_83, %c0_84] : memref<1x1x5xf32, #tpu.memory_space<vmem>>, vector<1x1x5xf32>
      %164 = vector.shape_cast %163 : vector<1x1x5xf32> to vector<1x5xf32>
      %165 = vector.shape_cast %162 : vector<1x5xf32> to vector<1x1x5xf32>
      tpu.vector_store %arg22[%c0_82, %c0_83, %c0_84], %165 {strides = array<i32>} : memref<1x1x5xf32, #tpu.memory_space<vmem>>, vector<1x1x5xf32>,
    } else {
    }
    return
  }
  func.func @transform_0(%arg0: i32, %arg1: i32) -> (i32, i32, i32) {
    %c0_i32 = arith.constant 0 : i32
    %c0_i32_0 = arith.constant 0 : i32
    %c0_i32_1 = arith.constant 0 : i32
    return %arg0, %c0_i32, %c0_i32_0 : i32, i32, i32
  }
  func.func @transform_1(%arg0: i32, %arg1: i32) -> (i32, i32, i32) {
    %c0_i32 = arith.constant 0 : i32
    %c0_i32_0 = arith.constant 0 : i32
    %c0_i32_1 = arith.constant 0 : i32
    return %arg0, %c0_i32, %c0_i32_0 : i32, i32, i32
  }
  func.func @transform_2(%arg0: i32, %arg1: i32) -> (i32, i32, i32) {
    %c0_i32 = arith.constant 0 : i32
    %c0_i32_0 = arith.constant 0 : i32
    %c0_i32_1 = arith.constant 0 : i32
    return %arg1, %c0_i32, %c0_i32_0 : i32, i32, i32
  }
  func.func @transform_3(%arg0: i32, %arg1: i32) -> (i32, i32, i32) {
    %c0_i32 = arith.constant 0 : i32
    %c0_i32_0 = arith.constant 0 : i32
    %c0_i32_1 = arith.constant 0 : i32
    return %arg1, %c0_i32, %c0_i32_0 : i32, i32, i32
  }
  func.func @transform_4(%arg0: i32, %arg1: i32) -> (i32, i32, i32) {
    %c0_i32 = arith.constant 0 : i32
    %c0_i32_0 = arith.constant 0 : i32
    %c0_i32_1 = arith.constant 0 : i32
    return %arg1, %c0_i32, %c0_i32_0 : i32, i32, i32
  }
  func.func @transform_5(%arg0: i32, %arg1: i32) -> (i32, i32, i32) {
    %c0_i32 = arith.constant 0 : i32
    %c0_i32_0 = arith.constant 0 : i32
    %c0_i32_1 = arith.constant 0 : i32
    return %arg1, %c0_i32, %c0_i32_0 : i32, i32, i32
  }
  func.func @transform_6(%arg0: i32, %arg1: i32) -> (i32, i32, i32) {
    %c0_i32 = arith.constant 0 : i32
    %c0_i32_0 = arith.constant 0 : i32
    %c0_i32_1 = arith.constant 0 : i32
    return %arg1, %c0_i32, %c0_i32_0 : i32, i32, i32
  }
  func.func @transform_7(%arg0: i32, %arg1: i32) -> (i32, i32, i32) {
    %c0_i32 = arith.constant 0 : i32
    %c0_i32_0 = arith.constant 0 : i32
    %c0_i32_1 = arith.constant 0 : i32
    return %arg1, %c0_i32, %c0_i32_0 : i32, i32, i32
  }
  func.func @transform_8(%arg0: i32, %arg1: i32) -> (i32, i32, i32) {
    %c0_i32 = arith.constant 0 : i32
    %c0_i32_0 = arith.constant 0 : i32
    %c0_i32_1 = arith.constant 0 : i32
    return %arg1, %c0_i32, %c0_i32_0 : i32, i32, i32
  }
  func.func @transform_9(%arg0: i32, %arg1: i32) -> (i32, i32, i32) {
    %c0_i32 = arith.constant 0 : i32
    %c0_i32_0 = arith.constant 0 : i32
    %c0_i32_1 = arith.constant 0 : i32
    return %arg1, %c0_i32, %c0_i32_0 : i32, i32, i32
  }
  func.func @transform_10(%arg0: i32, %arg1: i32) -> (i32, i32, i32) {
    %c0_i32 = arith.constant 0 : i32
    %c0_i32_0 = arith.constant 0 : i32
    %c0_i32_1 = arith.constant 0 : i32
    return %arg1, %c0_i32, %c0_i32_0 : i32, i32, i32
  }
  func.func @transform_11(%arg0: i32, %arg1: i32) -> (i32, i32, i32) {
    %c0_i32 = arith.constant 0 : i32
    %c0_i32_0 = arith.constant 0 : i32
    %c0_i32_1 = arith.constant 0 : i32
    return %arg1, %c0_i32, %c0_i32_0 : i32, i32, i32
  }
  func.func @transform_12(%arg0: i32, %arg1: i32) -> (i32, i32, i32) {
    %c0_i32 = arith.constant 0 : i32
    %c0_i32_0 = arith.constant 0 : i32
    %c0_i32_1 = arith.constant 0 : i32
    return %arg1, %c0_i32, %c0_i32_0 : i32, i32, i32
  }
  func.func @transform_13(%arg0: i32, %arg1: i32) -> (i32, i32, i32) {
    %c0_i32 = arith.constant 0 : i32
    %c0_i32_0 = arith.constant 0 : i32
    %c0_i32_1 = arith.constant 0 : i32
    return %arg1, %c0_i32, %c0_i32_0 : i32, i32, i32
  }
  func.func @transform_14(%arg0: i32, %arg1: i32) -> (i32, i32) {
    %c0_i32 = arith.constant 0 : i32
    %c0_i32_0 = arith.constant 0 : i32
    %c0_i32_1 = arith.constant 0 : i32
    return %c0_i32, %c0_i32_0 : i32, i32
  }
  func.func @transform_15(%arg0: i32, %arg1: i32) -> (i32, i32) {
    %c0_i32 = arith.constant 0 : i32
    %c0_i32_0 = arith.constant 0 : i32
    %c0_i32_1 = arith.constant 0 : i32
    return %c0_i32, %c0_i32_0 : i32, i32
  }
  func.func @transform_16(%arg0: i32, %arg1: i32) -> (i32, i32) {
    %c0_i32 = arith.constant 0 : i32
    %c0_i32_0 = arith.constant 0 : i32
    %c0_i32_1 = arith.constant 0 : i32
    return %c0_i32, %c0_i32_0 : i32, i32
  }
  func.func @transform_17(%arg0: i32, %arg1: i32) -> (i32, i32) {
    %c0_i32 = arith.constant 0 : i32
    %c0_i32_0 = arith.constant 0 : i32
    %c0_i32_1 = arith.constant 0 : i32
    return %c0_i32, %c0_i32_0 : i32, i32
  }
  func.func @transform_18(%arg0: i32, %arg1: i32) -> (i32, i32) {
    %c0_i32 = arith.constant 0 : i32
    %c0_i32_0 = arith.constant 0 : i32
    %c0_i32_1 = arith.constant 0 : i32
    return %c0_i32, %c0_i32_0 : i32, i32
  }
  func.func @transform_19(%arg0: i32, %arg1: i32) -> (i32, i32) {
    %c0_i32 = arith.constant 0 : i32
    %c0_i32_0 = arith.constant 0 : i32
    %c0_i32_1 = arith.constant 0 : i32
    return %c0_i32, %c0_i32_0 : i32, i32
  }
  func.func @transform_20(%arg0: i32, %arg1: i32) -> (i32, i32, i32) {
    %c0_i32 = arith.constant 0 : i32
    %c0_i32_0 = arith.constant 0 : i32
    %c0_i32_1 = arith.constant 0 : i32
    return %arg0, %c0_i32, %c0_i32_0 : i32, i32, i32
  }
}

</mosaic_0001>

<llo_original>
// kernel: tpu_custom_call.1
$region0: #{tpu_custom_call.1}
  #allocation0 [shape = 'u32[]', space=smem, size = 0x4, offset = 0x4, fixed_abs, tag = 'smem constant byte address 0x4 - core index']
  #allocation1 [shape = 'u32[144,128]{1,0:T(1,128)}', space=vmem, size = 0x12000, scoped, tag = 'internal scratch']
  #allocation2 [shape = 'f32[8,128]{1,0:T(8,128)}', space=vmem, size = 0x1000, scoped, tag = 'scratch operand']
  %s0 = inlined_call_operand.vmem [shape: f32[2,8,128], index: 0, kind: input, shape index: {}]
  %s1 = inlined_call_operand.vmem [shape: f32[2,1,8], index: 1, kind: input, shape index: {}]
  %s2 = inlined_call_operand.hbm [shape: bf16[2,128,384], index: 2, kind: input, shape index: {}]
  %s3 = inlined_call_operand.vmem [shape: f32[2,1,384], index: 3, kind: input, shape index: {}]
  %s4 = inlined_call_operand.vmem [shape: bf16[2,128,128], index: 4, kind: input, shape index: {}]
  %s5 = inlined_call_operand.vmem [shape: f32[2,1,128], index: 5, kind: input, shape index: {}]
  %s6 = inlined_call_operand.vmem [shape: f32[2,1,128], index: 6, kind: input, shape index: {}]
  %s7 = inlined_call_operand.vmem [shape: f32[2,1,128], index: 7, kind: input, shape index: {}]
  %s8 = inlined_call_operand.hbm [shape: bf16[2,128,256], index: 8, kind: input, shape index: {}]
  %s9 = inlined_call_operand.vmem [shape: f32[2,1,256], index: 9, kind: input, shape index: {}]
  %s10 = inlined_call_operand.hbm [shape: bf16[2,256,128], index: 10, kind: input, shape index: {}]
  %s11 = inlined_call_operand.vmem [shape: f32[2,1,128], index: 11, kind: input, shape index: {}]
  %s12 = inlined_call_operand.vmem [shape: f32[2,1,128], index: 12, kind: input, shape index: {}]
  %s13 = inlined_call_operand.vmem [shape: f32[2,1,128], index: 13, kind: input, shape index: {}]
  %s14 = inlined_call_operand.vmem [shape: f32[1,128], index: 14, kind: input, shape index: {}]
  %s15 = inlined_call_operand.vmem [shape: f32[1,128], index: 15, kind: input, shape index: {}]
  %s16 = inlined_call_operand.vmem [shape: f32[128,32], index: 16, kind: input, shape index: {}]
  %s17 = inlined_call_operand.vmem [shape: f32[1,32], index: 17, kind: input, shape index: {}]
  %s18 = inlined_call_operand.vmem [shape: f32[32,5], index: 18, kind: input, shape index: {}]
  %s19 = inlined_call_operand.vmem [shape: f32[1,5], index: 19, kind: input, shape index: {}]
  %s20 = inlined_call_operand.hbm [shape: f32[2,1,5], index: 20, kind: output, shape index: {}]
  %s21 = sld [smem:[#allocation0]]
  $region133: #{tpu_custom_call.1} parent=0
    _
  %s23 = ssub.s32 1, %s21
  %s24 = scalar_select 0, %s23, %s21
  $region1: #{tpu_custom_call.1} parent=0
    #allocation3 [shape = 'u8[196608]{0}', space=vmem, size = 0x30000, scoped, tag = 'input window, operand 2']
    #allocation4 [shape = 's32[2]{0}', space=sflag, size = 0x8, scoped, tag = 'scoped memory for tpu_custom_call.1']
    #allocation5 [shape = 's32[2]{0}', space=sflag, size = 0x8, scoped, tag = 'scoped memory for tpu_custom_call.1']
    #allocation6 [shape = 'u8[131072]{0}', space=vmem, size = 0x20000, scoped, tag = 'input window, operand 8']
    #allocation7 [shape = 's32[2]{0}', space=sflag, size = 0x8, scoped, tag = 'scoped memory for tpu_custom_call.1']
    #allocation8 [shape = 'u8[131072]{0}', space=vmem, size = 0x20000, scoped, tag = 'input window, operand 10']
    #allocation9 [shape = 'u8[1024]{0}', space=vmem, size = 0x400, scoped, tag = 'output window, operand 0']
    %25 = vsyncpa [#allocation4], 0
    %s26 = scalar_lea.sflag [#allocation4], 1
    %27 = vsyncpa %s26, 0
    %28 = vsyncpa [#allocation7], 0
    %s29 = scalar_lea.sflag [#allocation7], 1
    %30 = vsyncpa %s29, 0
    %31 = vsyncpa [#allocation5], 0
    %s32 = scalar_lea.sflag [#allocation5], 1
    %33 = vsyncpa %s32, 0
    loop: start=0, step=1, limit=6
    $region2: #{tpu_custom_call.1} parent=1 // loop_pre_header
      _
    $region3: #{tpu_custom_call.1} parent=1 // loop_header
      %s35 = sphi 0, %s39
      %p36 = scmp.ge.s32.totalorder %s35, 6
      %s42 = sphi 0, %s54
      %s43 = sphi 0, %s50
      %s44 = sphi 0, %s42
      %s45 = sphi 0, %s43
      %s46 = sphi 0, %s44
      %s47 = sphi 0, %s45
      %s57 = sphi 0, %s59
      %s60 = sphi 0, %s57
      %s61 = sphi 0, %s60
      %s77 = sphi 0, %s61
      %s83 = sphi 0, %s85
      %s86 = sphi 0, %s83
      %s87 = sphi 0, %s86
      %s103 = sphi 0, %s87
      %s109 = sphi 0, %s111
      %s112 = sphi 0, %s109
      %s113 = sphi 0, %s112
      %s129 = sphi 0, %s113
      %s135 = sphi 0, %s137
      %s138 = sphi 0, %s135
      %s139 = sphi 0, %s138
      %s155 = sphi 0, %s139
      %s161 = sphi 0, %s163
      %s164 = sphi 0, %s161
      %s165 = sphi 0, %s164
      %s181 = sphi 0, %s165
      %s187 = sphi 0, %s189
      %s190 = sphi 0, %s187
      %s191 = sphi 0, %s190
      %s207 = sphi 0, %s191
      %s213 = sphi 0, %s215
      %s216 = sphi 0, %s213
      %s217 = sphi 0, %s216
      %s233 = sphi 0, %s217
      %s239 = sphi 0, %s241
      %s242 = sphi 0, %s239
      %s243 = sphi 0, %s242
      %s259 = sphi 0, %s243
      %s265 = sphi 0, %s267
      %s268 = sphi 0, %s265
      %s269 = sphi 0, %s268
      %s285 = sphi 0, %s269
      %s291 = sphi 0, %s293
      %s294 = sphi 0, %s291
      %s295 = sphi 0, %s294
      %s311 = sphi 0, %s295
      %s317 = sphi 0, %s319
      %s320 = sphi 0, %s317
      %s321 = sphi 0, %s320
      %s337 = sphi 0, %s321
      %s343 = sphi 0, %s345
      %s346 = sphi 0, %s343
      %s347 = sphi 0, %s346
      %s363 = sphi 0, %s347
      %s369 = sphi 0, %s371
      %s372 = sphi 0, %s369
      %s373 = sphi 0, %s372
      %s389 = sphi 0, %s373
      %s395 = sphi 0, %s397
      %s398 = sphi 0, %s395
      %s399 = sphi 0, %s398
      %s415 = sphi 0, %s399
      %s419 = sphi 0, %s419
      %s421 = sphi 0, %s419
      %s422 = sphi 0, %s421
      %s436 = sphi 0, %s422
      %s440 = sphi 0, %s440
      %s442 = sphi 0, %s440
      %s443 = sphi 0, %s442
      %s457 = sphi 0, %s443
      %s461 = sphi 0, %s461
      %s463 = sphi 0, %s461
      %s464 = sphi 0, %s463
      %s478 = sphi 0, %s464
      %s482 = sphi 0, %s482
      %s484 = sphi 0, %s482
      %s485 = sphi 0, %s484
      %s499 = sphi 0, %s485
      %s503 = sphi 0, %s503
      %s505 = sphi 0, %s503
      %s506 = sphi 0, %s505
      %s520 = sphi 0, %s506
      %s524 = sphi 0, %s524
      %s526 = sphi 0, %s524
      %s527 = sphi 0, %s526
      %s541 = sphi 0, %s527
      %s547 = sphi 0, %s549
      %s550 = sphi 0, %s547
      %s551 = sphi 0, %s550
      %s567 = sphi 0, %s551
    $region4: #{tpu_custom_call.1} parent=1 // loop_header_branch
      %38 = sbr.rel (%p36) target = $region8
    $region5: #{tpu_custom_call.1} parent=1 // loop_body
      %s40 = ssub.s32 %s35, 1
      %s41 = ssub.s32 %s35, 2
      %s48 = sadd.s32 1, %s43
      %p49 = scmp.ge.s32.totalorder %s48, 2
      %s50 = scalar_select %p49, 0, %s48
      %s51 = sadd.s32 1, %s42
      %s52 = scalar_select %p49, %s51, %s42
      %p53 = scmp.ge.s32.totalorder %s52, 2
      %s54 = scalar_select %p53, 0, %s52
      %s55 = ssub.s32 %s42, %s54
      %p56 = scmp.eq.s32.totalorder %s55, 0
      %s58 = sadd.s32 %s57, 1
      %s59 = scalar_select %p56, %s57, %s58
      %p62 = pneg %p56
      %p63 = scmp.eq.s32.totalorder %s35, 3
      %p64 = por %p62, %p63
      %p65 = scmp.ne.s32.totalorder %s57, %s60
      %p66 = scmp.eq.s32.totalorder %s35, 0
      %p67 = por %p65, %p66
      %p68 = scmp.ne.s32.totalorder %s57, %s60
      %p69 = scmp.eq.s32.totalorder %s40, 3
      %p70 = por %p68, %p69
      %p71 = scmp.ne.s32.totalorder %s60, %s61
      %p72 = scmp.eq.s32.totalorder %s40, 0
      %p73 = por %p71, %p72
      %p74 = scmp.ne.s32.totalorder %s60, %s61
      %p75 = scmp.eq.s32.totalorder %s41, 3
      %p76 = por %p74, %p75
      %p78 = scmp.ne.s32.totalorder %s61, %s77
      %p79 = scmp.eq.s32.totalorder %s41, 0
      %p80 = por %p78, %p79
      %s81 = ssub.s32 %s42, %s54
      %p82 = scmp.eq.s32.totalorder %s81, 0
      %s84 = sadd.s32 %s83, 1
      %s85 = scalar_select %p82, %s83, %s84
      %p88 = pneg %p82
      %p89 = scmp.eq.s32.totalorder %s35, 3
      %p90 = por %p88, %p89
      %p91 = scmp.ne.s32.totalorder %s83, %s86
      %p92 = scmp.eq.s32.totalorder %s35, 0
      %p93 = por %p91, %p92
      %p94 = scmp.ne.s32.totalorder %s83, %s86
      %p95 = scmp.eq.s32.totalorder %s40, 3
      %p96 = por %p94, %p95
      %p97 = scmp.ne.s32.totalorder %s86, %s87
      %p98 = scmp.eq.s32.totalorder %s40, 0
      %p99 = por %p97, %p98
      %p100 = scmp.ne.s32.totalorder %s86, %s87
      %p101 = scmp.eq.s32.totalorder %s41, 3
      %p102 = por %p100, %p101
      %p104 = scmp.ne.s32.totalorder %s87, %s103
      %p105 = scmp.eq.s32.totalorder %s41, 0
      %p106 = por %p104, %p105
      %s107 = ssub.s32 %s43, %s50
      %p108 = scmp.eq.s32.totalorder %s107, 0
      %s110 = sadd.s32 %s109, 1
      %s111 = scalar_select %p108, %s109, %s110
      %p114 = pneg %p108
      %p115 = scmp.eq.s32.totalorder %s35, 3
      %p116 = por %p114, %p115
      %p117 = scmp.ne.s32.totalorder %s109, %s112
      %p118 = scmp.eq.s32.totalorder %s35, 0
      %p119 = por %p117, %p118
      %p120 = scmp.ne.s32.totalorder %s109, %s112
      %p121 = scmp.eq.s32.totalorder %s40, 3
      %p122 = por %p120, %p121
      %p123 = scmp.ne.s32.totalorder %s112, %s113
      %p124 = scmp.eq.s32.totalorder %s40, 0
      %p125 = por %p123, %p124
      %p126 = scmp.ne.s32.totalorder %s112, %s113
      %p127 = scmp.eq.s32.totalorder %s41, 3
      %p128 = por %p126, %p127
      %p130 = scmp.ne.s32.totalorder %s113, %s129
      %p131 = scmp.eq.s32.totalorder %s41, 0
      %p132 = por %p130, %p131
      %s133 = ssub.s32 %s43, %s50
      %p134 = scmp.eq.s32.totalorder %s133, 0
      %s136 = sadd.s32 %s135, 1
      %s137 = scalar_select %p134, %s135, %s136
      %p140 = pneg %p134
      %p141 = scmp.eq.s32.totalorder %s35, 3
      %p142 = por %p140, %p141
      %p143 = scmp.ne.s32.totalorder %s135, %s138
      %p144 = scmp.eq.s32.totalorder %s35, 0
      %p145 = por %p143, %p144
      %p146 = scmp.ne.s32.totalorder %s135, %s138
      %p147 = scmp.eq.s32.totalorder %s40, 3
      %p148 = por %p146, %p147
      %p149 = scmp.ne.s32.totalorder %s138, %s139
      %p150 = scmp.eq.s32.totalorder %s40, 0
      %p151 = por %p149, %p150
      %p152 = scmp.ne.s32.totalorder %s138, %s139
      %p153 = scmp.eq.s32.totalorder %s41, 3
      %p154 = por %p152, %p153
      %p156 = scmp.ne.s32.totalorder %s139, %s155
      %p157 = scmp.eq.s32.totalorder %s41, 0
      %p158 = por %p156, %p157
      %s159 = ssub.s32 %s43, %s50
      %p160 = scmp.eq.s32.totalorder %s159, 0
      %s162 = sadd.s32 %s161, 1
      %s163 = scalar_select %p160, %s161, %s162
      %p166 = pneg %p160
      %p167 = scmp.eq.s32.totalorder %s35, 3
      %p168 = por %p166, %p167
      %p169 = scmp.ne.s32.totalorder %s161, %s164
      %p170 = scmp.eq.s32.totalorder %s35, 0
      %p171 = por %p169, %p170
      %p172 = scmp.ne.s32.totalorder %s161, %s164
      %p173 = scmp.eq.s32.totalorder %s40, 3
      %p174 = por %p172, %p173
      %p175 = scmp.ne.s32.totalorder %s164, %s165
      %p176 = scmp.eq.s32.totalorder %s40, 0
      %p177 = por %p175, %p176
      %p178 = scmp.ne.s32.totalorder %s164, %s165
      %p179 = scmp.eq.s32.totalorder %s41, 3
      %p180 = por %p178, %p179
      %p182 = scmp.ne.s32.totalorder %s165, %s181
      %p183 = scmp.eq.s32.totalorder %s41, 0
      %p184 = por %p182, %p183
      %s185 = ssub.s32 %s43, %s50
      %p186 = scmp.eq.s32.totalorder %s185, 0
      %s188 = sadd.s32 %s187, 1
      %s189 = scalar_select %p186, %s187, %s188
      %p192 = pneg %p186
      %p193 = scmp.eq.s32.totalorder %s35, 3
      %p194 = por %p192, %p193
      %p195 = scmp.ne.s32.totalorder %s187, %s190
      %p196 = scmp.eq.s32.totalorder %s35, 0
      %p197 = por %p195, %p196
      %p198 = scmp.ne.s32.totalorder %s187, %s190
      %p199 = scmp.eq.s32.totalorder %s40, 3
      %p200 = por %p198, %p199
      %p201 = scmp.ne.s32.totalorder %s190, %s191
      %p202 = scmp.eq.s32.totalorder %s40, 0
      %p203 = por %p201, %p202
      %p204 = scmp.ne.s32.totalorder %s190, %s191
      %p205 = scmp.eq.s32.totalorder %s41, 3
      %p206 = por %p204, %p205
      %p208 = scmp.ne.s32.totalorder %s191, %s207
      %p209 = scmp.eq.s32.totalorder %s41, 0
      %p210 = por %p208, %p209
      %s211 = ssub.s32 %s43, %s50
      %p212 = scmp.eq.s32.totalorder %s211, 0
      %s214 = sadd.s32 %s213, 1
      %s215 = scalar_select %p212, %s213, %s214
      %p218 = pneg %p212
      %p219 = scmp.eq.s32.totalorder %s35, 3
      %p220 = por %p218, %p219
      %p221 = scmp.ne.s32.totalorder %s213, %s216
      %p222 = scmp.eq.s32.totalorder %s35, 0
      %p223 = por %p221, %p222
      %p224 = scmp.ne.s32.totalorder %s213, %s216
      %p225 = scmp.eq.s32.totalorder %s40, 3
      %p226 = por %p224, %p225
      %p227 = scmp.ne.s32.totalorder %s216, %s217
      %p228 = scmp.eq.s32.totalorder %s40, 0
      %p229 = por %p227, %p228
      %p230 = scmp.ne.s32.totalorder %s216, %s217
      %p231 = scmp.eq.s32.totalorder %s41, 3
      %p232 = por %p230, %p231
      %p234 = scmp.ne.s32.totalorder %s217, %s233
      %p235 = scmp.eq.s32.totalorder %s41, 0
      %p236 = por %p234, %p235
      %s237 = ssub.s32 %s43, %s50
      %p238 = scmp.eq.s32.totalorder %s237, 0
      %s240 = sadd.s32 %s239, 1
      %s241 = scalar_select %p238, %s239, %s240
      %p244 = pneg %p238
      %p245 = scmp.eq.s32.totalorder %s35, 3
      %p246 = por %p244, %p245
      %p247 = scmp.ne.s32.totalorder %s239, %s242
      %p248 = scmp.eq.s32.totalorder %s35, 0
      %p249 = por %p247, %p248
      %p250 = scmp.ne.s32.totalorder %s239, %s242
      %p251 = scmp.eq.s32.totalorder %s40, 3
      %p252 = por %p250, %p251
      %p253 = scmp.ne.s32.totalorder %s242, %s243
      %p254 = scmp.eq.s32.totalorder %s40, 0
      %p255 = por %p253, %p254
      %p256 = scmp.ne.s32.totalorder %s242, %s243
      %p257 = scmp.eq.s32.totalorder %s41, 3
      %p258 = por %p256, %p257
      %p260 = scmp.ne.s32.totalorder %s243, %s259
      %p261 = scmp.eq.s32.totalorder %s41, 0
      %p262 = por %p260, %p261
      %s263 = ssub.s32 %s43, %s50
      %p264 = scmp.eq.s32.totalorder %s263, 0
      %s266 = sadd.s32 %s265, 1
      %s267 = scalar_select %p264, %s265, %s266
      %p270 = pneg %p264
      %p271 = scmp.eq.s32.totalorder %s35, 3
      %p272 = por %p270, %p271
      %p273 = scmp.ne.s32.totalorder %s265, %s268
      %p274 = scmp.eq.s32.totalorder %s35, 0
      %p275 = por %p273, %p274
      %p276 = scmp.ne.s32.totalorder %s265, %s268
      %p277 = scmp.eq.s32.totalorder %s40, 3
      %p278 = por %p276, %p277
      %p279 = scmp.ne.s32.totalorder %s268, %s269
      %p280 = scmp.eq.s32.totalorder %s40, 0
      %p281 = por %p279, %p280
      %p282 = scmp.ne.s32.totalorder %s268, %s269
      %p283 = scmp.eq.s32.totalorder %s41, 3
      %p284 = por %p282, %p283
      %p286 = scmp.ne.s32.totalorder %s269, %s285
      %p287 = scmp.eq.s32.totalorder %s41, 0
      %p288 = por %p286, %p287
      %s289 = ssub.s32 %s43, %s50
      %p290 = scmp.eq.s32.totalorder %s289, 0
      %s292 = sadd.s32 %s291, 1
      %s293 = scalar_select %p290, %s291, %s292
      %p296 = pneg %p290
      %p297 = scmp.eq.s32.totalorder %s35, 3
      %p298 = por %p296, %p297
      %p299 = scmp.ne.s32.totalorder %s291, %s294
      %p300 = scmp.eq.s32.totalorder %s35, 0
      %p301 = por %p299, %p300
      %p302 = scmp.ne.s32.totalorder %s291, %s294
      %p303 = scmp.eq.s32.totalorder %s40, 3
      %p304 = por %p302, %p303
      %p305 = scmp.ne.s32.totalorder %s294, %s295
      %p306 = scmp.eq.s32.totalorder %s40, 0
      %p307 = por %p305, %p306
      %p308 = scmp.ne.s32.totalorder %s294, %s295
      %p309 = scmp.eq.s32.totalorder %s41, 3
      %p310 = por %p308, %p309
      %p312 = scmp.ne.s32.totalorder %s295, %s311
      %p313 = scmp.eq.s32.totalorder %s41, 0
      %p314 = por %p312, %p313
      %s315 = ssub.s32 %s43, %s50
      %p316 = scmp.eq.s32.totalorder %s315, 0
      %s318 = sadd.s32 %s317, 1
      %s319 = scalar_select %p316, %s317, %s318
      %p322 = pneg %p316
      %p323 = scmp.eq.s32.totalorder %s35, 3
      %p324 = por %p322, %p323
      %p325 = scmp.ne.s32.totalorder %s317, %s320
      %p326 = scmp.eq.s32.totalorder %s35, 0
      %p327 = por %p325, %p326
      %p328 = scmp.ne.s32.totalorder %s317, %s320
      %p329 = scmp.eq.s32.totalorder %s40, 3
      %p330 = por %p328, %p329
      %p331 = scmp.ne.s32.totalorder %s320, %s321
      %p332 = scmp.eq.s32.totalorder %s40, 0
      %p333 = por %p331, %p332
      %p334 = scmp.ne.s32.totalorder %s320, %s321
      %p335 = scmp.eq.s32.totalorder %s41, 3
      %p336 = por %p334, %p335
      %p338 = scmp.ne.s32.totalorder %s321, %s337
      %p339 = scmp.eq.s32.totalorder %s41, 0
      %p340 = por %p338, %p339
      %s341 = ssub.s32 %s43, %s50
      %p342 = scmp.eq.s32.totalorder %s341, 0
      %s344 = sadd.s32 %s343, 1
      %s345 = scalar_select %p342, %s343, %s344
      %p348 = pneg %p342
      %p349 = scmp.eq.s32.totalorder %s35, 3
      %p350 = por %p348, %p349
      %p351 = scmp.ne.s32.totalorder %s343, %s346
      %p352 = scmp.eq.s32.totalorder %s35, 0
      %p353 = por %p351, %p352
      %p354 = scmp.ne.s32.totalorder %s343, %s346
      %p355 = scmp.eq.s32.totalorder %s40, 3
      %p356 = por %p354, %p355
      %p357 = scmp.ne.s32.totalorder %s346, %s347
      %p358 = scmp.eq.s32.totalorder %s40, 0
      %p359 = por %p357, %p358
      %p360 = scmp.ne.s32.totalorder %s346, %s347
      %p361 = scmp.eq.s32.totalorder %s41, 3
      %p362 = por %p360, %p361
      %p364 = scmp.ne.s32.totalorder %s347, %s363
      %p365 = scmp.eq.s32.totalorder %s41, 0
      %p366 = por %p364, %p365
      %s367 = ssub.s32 %s43, %s50
      %p368 = scmp.eq.s32.totalorder %s367, 0
      %s370 = sadd.s32 %s369, 1
      %s371 = scalar_select %p368, %s369, %s370
      %p374 = pneg %p368
      %p375 = scmp.eq.s32.totalorder %s35, 3
      %p376 = por %p374, %p375
      %p377 = scmp.ne.s32.totalorder %s369, %s372
      %p378 = scmp.eq.s32.totalorder %s35, 0
      %p379 = por %p377, %p378
      %p380 = scmp.ne.s32.totalorder %s369, %s372
      %p381 = scmp.eq.s32.totalorder %s40, 3
      %p382 = por %p380, %p381
      %p383 = scmp.ne.s32.totalorder %s372, %s373
      %p384 = scmp.eq.s32.totalorder %s40, 0
      %p385 = por %p383, %p384
      %p386 = scmp.ne.s32.totalorder %s372, %s373
      %p387 = scmp.eq.s32.totalorder %s41, 3
      %p388 = por %p386, %p387
      %p390 = scmp.ne.s32.totalorder %s373, %s389
      %p391 = scmp.eq.s32.totalorder %s41, 0
      %p392 = por %p390, %p391
      %s393 = ssub.s32 %s43, %s50
      %p394 = scmp.eq.s32.totalorder %s393, 0
      %s396 = sadd.s32 %s395, 1
      %s397 = scalar_select %p394, %s395, %s396
      %p400 = pneg %p394
      %p401 = scmp.eq.s32.totalorder %s35, 3
      %p402 = por %p400, %p401
      %p403 = scmp.ne.s32.totalorder %s395, %s398
      %p404 = scmp.eq.s32.totalorder %s35, 0
      %p405 = por %p403, %p404
      %p406 = scmp.ne.s32.totalorder %s395, %s398
      %p407 = scmp.eq.s32.totalorder %s40, 3
      %p408 = por %p406, %p407
      %p409 = scmp.ne.s32.totalorder %s398, %s399
      %p410 = scmp.eq.s32.totalorder %s40, 0
      %p411 = por %p409, %p410
      %p412 = scmp.ne.s32.totalorder %s398, %s399
      %p413 = scmp.eq.s32.totalorder %s41, 3
      %p414 = por %p412, %p413
      %p416 = scmp.ne.s32.totalorder %s399, %s415
      %p417 = scmp.eq.s32.totalorder %s41, 0
      %p418 = por %p416, %p417
      %s420 = sadd.s32 %s419, 1
      %p423 = scmp.eq.s32.totalorder %s35, 3
      %p424 = scmp.ne.s32.totalorder %s419, %s421
      %p425 = scmp.eq.s32.totalorder %s35, 0
      %p426 = por %p424, %p425
      %p427 = scmp.ne.s32.totalorder %s419, %s421
      %p428 = scmp.eq.s32.totalorder %s40, 3
      %p429 = por %p427, %p428
      %p430 = scmp.ne.s32.totalorder %s421, %s422
      %p431 = scmp.eq.s32.totalorder %s40, 0
      %p432 = por %p430, %p431
      %p433 = scmp.ne.s32.totalorder %s421, %s422
      %p434 = scmp.eq.s32.totalorder %s41, 3
      %p435 = por %p433, %p434
      %p437 = scmp.ne.s32.totalorder %s422, %s436
      %p438 = scmp.eq.s32.totalorder %s41, 0
      %p439 = por %p437, %p438
      %s441 = sadd.s32 %s440, 1
      %p444 = scmp.eq.s32.totalorder %s35, 3
      %p445 = scmp.ne.s32.totalorder %s440, %s442
      %p446 = scmp.eq.s32.totalorder %s35, 0
      %p447 = por %p445, %p446
      %p448 = scmp.ne.s32.totalorder %s440, %s442
      %p449 = scmp.eq.s32.totalorder %s40, 3
      %p450 = por %p448, %p449
      %p451 = scmp.ne.s32.totalorder %s442, %s443
      %p452 = scmp.eq.s32.totalorder %s40, 0
      %p453 = por %p451, %p452
      %p454 = scmp.ne.s32.totalorder %s442, %s443
      %p455 = scmp.eq.s32.totalorder %s41, 3
      %p456 = por %p454, %p455
      %p458 = scmp.ne.s32.totalorder %s443, %s457
      %p459 = scmp.eq.s32.totalorder %s41, 0
      %p460 = por %p458, %p459
      %s462 = sadd.s32 %s461, 1
      %p465 = scmp.eq.s32.totalorder %s35, 3
      %p466 = scmp.ne.s32.totalorder %s461, %s463
      %p467 = scmp.eq.s32.totalorder %s35, 0
      %p468 = por %p466, %p467
      %p469 = scmp.ne.s32.totalorder %s461, %s463
      %p470 = scmp.eq.s32.totalorder %s40, 3
      %p471 = por %p469, %p470
      %p472 = scmp.ne.s32.totalorder %s463, %s464
      %p473 = scmp.eq.s32.totalorder %s40, 0
      %p474 = por %p472, %p473
      %p475 = scmp.ne.s32.totalorder %s463, %s464
      %p476 = scmp.eq.s32.totalorder %s41, 3
      %p477 = por %p475, %p476
      %p479 = scmp.ne.s32.totalorder %s464, %s478
      %p480 = scmp.eq.s32.totalorder %s41, 0
      %p481 = por %p479, %p480
      %s483 = sadd.s32 %s482, 1
      %p486 = scmp.eq.s32.totalorder %s35, 3
      %p487 = scmp.ne.s32.totalorder %s482, %s484
      %p488 = scmp.eq.s32.totalorder %s35, 0
      %p489 = por %p487, %p488
      %p490 = scmp.ne.s32.totalorder %s482, %s484
      %p491 = scmp.eq.s32.totalorder %s40, 3
      %p492 = por %p490, %p491
      %p493 = scmp.ne.s32.totalorder %s484, %s485
      %p494 = scmp.eq.s32.totalorder %s40, 0
      %p495 = por %p493, %p494
      %p496 = scmp.ne.s32.totalorder %s484, %s485
      %p497 = scmp.eq.s32.totalorder %s41, 3
      %p498 = por %p496, %p497
      %p500 = scmp.ne.s32.totalorder %s485, %s499
      %p501 = scmp.eq.s32.totalorder %s41, 0
      %p502 = por %p500, %p501
      %s504 = sadd.s32 %s503, 1
      %p507 = scmp.eq.s32.totalorder %s35, 3
      %p508 = scmp.ne.s32.totalorder %s503, %s505
      %p509 = scmp.eq.s32.totalorder %s35, 0
      %p510 = por %p508, %p509
      %p511 = scmp.ne.s32.totalorder %s503, %s505
      %p512 = scmp.eq.s32.totalorder %s40, 3
      %p513 = por %p511, %p512
      %p514 = scmp.ne.s32.totalorder %s505, %s506
      %p515 = scmp.eq.s32.totalorder %s40, 0
      %p516 = por %p514, %p515
      %p517 = scmp.ne.s32.totalorder %s505, %s506
      %p518 = scmp.eq.s32.totalorder %s41, 3
      %p519 = por %p517, %p518
      %p521 = scmp.ne.s32.totalorder %s506, %s520
      %p522 = scmp.eq.s32.totalorder %s41, 0
      %p523 = por %p521, %p522
      %s525 = sadd.s32 %s524, 1
      %p528 = scmp.eq.s32.totalorder %s35, 3
      %p529 = scmp.ne.s32.totalorder %s524, %s526
      %p530 = scmp.eq.s32.totalorder %s35, 0
      %p531 = por %p529, %p530
      %p532 = scmp.ne.s32.totalorder %s524, %s526
      %p533 = scmp.eq.s32.totalorder %s40, 3
      %p534 = por %p532, %p533
      %p535 = scmp.ne.s32.totalorder %s526, %s527
      %p536 = scmp.eq.s32.totalorder %s40, 0
      %p537 = por %p535, %p536
      %p538 = scmp.ne.s32.totalorder %s526, %s527
      %p539 = scmp.eq.s32.totalorder %s41, 3
      %p540 = por %p538, %p539
      %p542 = scmp.ne.s32.totalorder %s527, %s541
      %p543 = scmp.eq.s32.totalorder %s41, 0
      %p544 = por %p542, %p543
      %s545 = ssub.s32 %s42, %s54
      %p546 = scmp.eq.s32.totalorder %s545, 0
      %s548 = sadd.s32 %s547, 1
      %s549 = scalar_select %p546, %s547, %s548
      %p552 = pneg %p546
      %p553 = scmp.eq.s32.totalorder %s35, 3
      %p554 = por %p552, %p553
      %p555 = scmp.ne.s32.totalorder %s547, %s550
      %p556 = scmp.eq.s32.totalorder %s35, 0
      %p557 = por %p555, %p556
      %p558 = scmp.ne.s32.totalorder %s547, %s550
      %p559 = scmp.eq.s32.totalorder %s40, 3
      %p560 = por %p558, %p559
      %p561 = scmp.ne.s32.totalorder %s550, %s551
      %p562 = scmp.eq.s32.totalorder %s40, 0
      %p563 = por %p561, %p562
      %p564 = scmp.ne.s32.totalorder %s550, %s551
      %p565 = scmp.eq.s32.totalorder %s41, 3
      %p566 = por %p564, %p565
      %p568 = scmp.ne.s32.totalorder %s551, %s567
      %p569 = scmp.eq.s32.totalorder %s41, 0
      %p570 = por %p568, %p569
      %p571 = scmp.le.s32.totalorder 1, %s35
      %p572 = scmp.lt.s32.totalorder %s35, 5
      %p573 = pnand %p571, %p572
      %p574 = pneg %p573
      // Predicated region
      $region9: #{tpu_custom_call.1} parent=5 // pred_check
        _
      $region10: #{tpu_custom_call.1} parent=5 // pred_check_branch
        %576 = sbr.rel (%p573) target = $region12
      $region11: #{tpu_custom_call.1} parent=5 // pred_region
        %s577 = ssub.s32 %s35, 1
        // Predicated region
        $region13: #{tpu_custom_call.1} parent=11 // pred_check
          %p578 = pneg %p432
        $region14: #{tpu_custom_call.1} parent=11 // pred_check_branch
          %580 = sbr.rel (%p578) target = $region16
        $region15: #{tpu_custom_call.1} parent=11 // pred_region
          _
        $region16: #{tpu_custom_call.1} parent=11 // pred_fallthru
          _
        // Predicated region
        $region17: #{tpu_custom_call.1} parent=11 // pred_check
          %p581 = pneg %p453
        $region18: #{tpu_custom_call.1} parent=11 // pred_check_branch
          %583 = sbr.rel (%p581) target = $region20
        $region19: #{tpu_custom_call.1} parent=11 // pred_region
          _
        $region20: #{tpu_custom_call.1} parent=11 // pred_fallthru
          _
        // Predicated region
        $region21: #{tpu_custom_call.1} parent=11 // pred_check
          %p584 = pneg %p474
        $region22: #{tpu_custom_call.1} parent=11 // pred_check_branch
          %586 = sbr.rel (%p584) target = $region24
        $region23: #{tpu_custom_call.1} parent=11 // pred_region
          _
        $region24: #{tpu_custom_call.1} parent=11 // pred_fallthru
          _
        // Predicated region
        $region25: #{tpu_custom_call.1} parent=11 // pred_check
          %p587 = pneg %p495
        $region26: #{tpu_custom_call.1} parent=11 // pred_check_branch
          %589 = sbr.rel (%p587) target = $region28
        $region27: #{tpu_custom_call.1} parent=11 // pred_region
          _
        $region28: #{tpu_custom_call.1} parent=11 // pred_fallthru
          _
        // Predicated region
        $region29: #{tpu_custom_call.1} parent=11 // pred_check
          %p590 = pneg %p516
        $region30: #{tpu_custom_call.1} parent=11 // pred_check_branch
          %592 = sbr.rel (%p590) target = $region32
        $region31: #{tpu_custom_call.1} parent=11 // pred_region
          _
        $region32: #{tpu_custom_call.1} parent=11 // pred_fallthru
          _
        // Predicated region
        $region33: #{tpu_custom_call.1} parent=11 // pred_check
          %p593 = pneg %p537
        $region34: #{tpu_custom_call.1} parent=11 // pred_check_branch
          %595 = sbr.rel (%p593) target = $region36
        $region35: #{tpu_custom_call.1} parent=11 // pred_region
          _
        $region36: #{tpu_custom_call.1} parent=11 // pred_fallthru
          _
      $region12: #{tpu_custom_call.1} parent=5 // pred_fallthru
        _
      %p596 = scmp.lt.s32.totalorder %s35, 4
      // Predicated region
      $region37: #{tpu_custom_call.1} parent=5 // pred_check
        %p597 = pneg %p596
      $region38: #{tpu_custom_call.1} parent=5 // pred_check_branch
        %599 = sbr.rel (%p597) target = $region40
      $region39: #{tpu_custom_call.1} parent=5 // pred_region
        // Predicated region
        $region41: #{tpu_custom_call.1} parent=39 // pred_check
          %p600 = pneg %p67
        $region42: #{tpu_custom_call.1} parent=39 // pred_check_branch
          %602 = sbr.rel (%p600) target = $region44
        $region43: #{tpu_custom_call.1} parent=39 // pred_region
          %p603 = scmp.lt.s32.totalorder %s42, 1
          %s604 = scalar_select %p603, %s42, 1
          %s605 = smul.addr %s604, 8
          %s606 = scalar_lea.vmem %s0, %s605
        $region44: #{tpu_custom_call.1} parent=39 // pred_fallthru
          _
        // Predicated region
        $region45: #{tpu_custom_call.1} parent=39 // pred_check
          %p607 = pneg %p93
        $region46: #{tpu_custom_call.1} parent=39 // pred_check_branch
          %609 = sbr.rel (%p607) target = $region48
        $region47: #{tpu_custom_call.1} parent=39 // pred_region
          %p610 = scmp.lt.s32.totalorder %s42, 1
          %s611 = scalar_select %p610, %s42, 1
          %s612 = scalar_lea.vmem %s1, %s611
        $region48: #{tpu_custom_call.1} parent=39 // pred_fallthru
          _
        // Predicated region
        $region49: #{tpu_custom_call.1} parent=39 // pred_check
          %p613 = pneg %p119
        $region50: #{tpu_custom_call.1} parent=39 // pred_check_branch
          %615 = sbr.rel (%p613) target = $region52
        $region51: #{tpu_custom_call.1} parent=39 // pred_region
          %s616 = sand.u32 %s109, 1
          %s617 = scalar_lea.sflag [#allocation4], %s616
          %s618 = sand.u32 %s109, 1
          %s619 = smul.addr %s618, 192
          %s620 = scalar_lea.vmem [#allocation3], %s619
          %s622 = ssub.s32 3072, 3072
          %623 = vsyncadd %s617, %s622
          %s624 = smul.addr %s43, 48
          %s625 = smul.addr %s624, 64
          %s626 = scalar_lea.hbm %s2, %s625
          %s627 = sshll.u32 %s620, 4
          %s628 = int_to_ptr.vmem [resolvable:$true] %s627
          %633 = dma.hbm_to_vmem [thread:$0]  %s626, 3072, %s628, %s617, 192, 192, 12
        $region52: #{tpu_custom_call.1} parent=39 // pred_fallthru
          _
        // Predicated region
        $region53: #{tpu_custom_call.1} parent=39 // pred_check
          %p634 = pneg %p145
        $region54: #{tpu_custom_call.1} parent=39 // pred_check_branch
          %636 = sbr.rel (%p634) target = $region56
        $region55: #{tpu_custom_call.1} parent=39 // pred_region
          %p637 = scmp.lt.s32.totalorder %s43, 1
          %s638 = scalar_select %p637, %s43, 1
          %s639 = smul.addr %s638, 3
          %s640 = scalar_lea.vmem %s3, %s639
        $region56: #{tpu_custom_call.1} parent=39 // pred_fallthru
          _
        // Predicated region
        $region57: #{tpu_custom_call.1} parent=39 // pred_check
          %p641 = pneg %p171
        $region58: #{tpu_custom_call.1} parent=39 // pred_check_branch
          %643 = sbr.rel (%p641) target = $region60
        $region59: #{tpu_custom_call.1} parent=39 // pred_region
          %p644 = scmp.lt.s32.totalorder %s43, 1
          %s645 = scalar_select %p644, %s43, 1
          %s646 = smul.addr %s645, 16
          %s647 = smul.addr %s646, 4
          %s648 = scalar_lea.vmem %s4, %s647
        $region60: #{tpu_custom_call.1} parent=39 // pred_fallthru
          _
        // Predicated region
        $region61: #{tpu_custom_call.1} parent=39 // pred_check
          %p649 = pneg %p197
        $region62: #{tpu_custom_call.1} parent=39 // pred_check_branch
          %651 = sbr.rel (%p649) target = $region64
        $region63: #{tpu_custom_call.1} parent=39 // pred_region
          %p652 = scmp.lt.s32.totalorder %s43, 1
          %s653 = scalar_select %p652, %s43, 1
          %s654 = scalar_lea.vmem %s5, %s653
        $region64: #{tpu_custom_call.1} parent=39 // pred_fallthru
          _
        // Predicated region
        $region65: #{tpu_custom_call.1} parent=39 // pred_check
          %p655 = pneg %p223
        $region66: #{tpu_custom_call.1} parent=39 // pred_check_branch
          %657 = sbr.rel (%p655) target = $region68
        $region67: #{tpu_custom_call.1} parent=39 // pred_region
          %p658 = scmp.lt.s32.totalorder %s43, 1
          %s659 = scalar_select %p658, %s43, 1
          %s660 = scalar_lea.vmem %s6, %s659
        $region68: #{tpu_custom_call.1} parent=39 // pred_fallthru
          _
        // Predicated region
        $region69: #{tpu_custom_call.1} parent=39 // pred_check
          %p661 = pneg %p249
        $region70: #{tpu_custom_call.1} parent=39 // pred_check_branch
          %663 = sbr.rel (%p661) target = $region72
        $region71: #{tpu_custom_call.1} parent=39 // pred_region
          %p664 = scmp.lt.s32.totalorder %s43, 1
          %s665 = scalar_select %p664, %s43, 1
          %s666 = scalar_lea.vmem %s7, %s665
        $region72: #{tpu_custom_call.1} parent=39 // pred_fallthru
          _
        // Predicated region
        $region73: #{tpu_custom_call.1} parent=39 // pred_check
          %p667 = pneg %p275
        $region74: #{tpu_custom_call.1} parent=39 // pred_check_branch
          %669 = sbr.rel (%p667) target = $region76
        $region75: #{tpu_custom_call.1} parent=39 // pred_region
          %s670 = sand.u32 %s35, 1
          %s671 = scalar_lea.sflag [#allocation7], %s670
          %s672 = sand.u32 %s265, 1
          %s673 = smul.addr %s672, 128
          %s674 = scalar_lea.vmem [#allocation6], %s673
          %s676 = ssub.s32 2048, 2048
          %677 = vsyncadd %s671, %s676
          %s678 = smul.addr %s43, 32
          %s679 = smul.addr %s678, 64
          %s680 = scalar_lea.hbm %s8, %s679
          %s681 = sshll.u32 %s674, 4
          %s682 = int_to_ptr.vmem [resolvable:$true] %s681
          %687 = dma.hbm_to_vmem [thread:$0]  %s680, 2048, %s682, %s671, 128, 128, 8
        $region76: #{tpu_custom_call.1} parent=39 // pred_fallthru
          _
        // Predicated region
        $region77: #{tpu_custom_call.1} parent=39 // pred_check
          %p688 = pneg %p301
        $region78: #{tpu_custom_call.1} parent=39 // pred_check_branch
          %690 = sbr.rel (%p688) target = $region80
        $region79: #{tpu_custom_call.1} parent=39 // pred_region
          %p691 = scmp.lt.s32.totalorder %s43, 1
          %s692 = scalar_select %p691, %s43, 1
          %s693 = smul.addr %s692, 2
          %s694 = scalar_lea.vmem %s9, %s693
        $region80: #{tpu_custom_call.1} parent=39 // pred_fallthru
          _
        // Predicated region
        $region81: #{tpu_custom_call.1} parent=39 // pred_check
          %p695 = pneg %p327
        $region82: #{tpu_custom_call.1} parent=39 // pred_check_branch
          %697 = sbr.rel (%p695) target = $region84
        $region83: #{tpu_custom_call.1} parent=39 // pred_region
          %s698 = sand.u32 %s35, 1
          %s699 = scalar_lea.sflag [#allocation7], %s698
          %s700 = sand.u32 %s317, 1
          %s701 = smul.addr %s700, 128
          %s702 = scalar_lea.vmem [#allocation8], %s701
          %s704 = ssub.s32 2048, 2048
          %705 = vsyncadd %s699, %s704
          %s706 = smul.addr %s43, 32
          %s707 = smul.addr %s706, 64
          %s708 = scalar_lea.hbm %s10, %s707
          %s709 = sshll.u32 %s702, 4
          %s710 = int_to_ptr.vmem [resolvable:$true] %s709
          %715 = dma.hbm_to_vmem [thread:$0]  %s708, 2048, %s710, %s699, 64, 64, 4
        $region84: #{tpu_custom_call.1} parent=39 // pred_fallthru
          _
        // Predicated region
        $region85: #{tpu_custom_call.1} parent=39 // pred_check
          %p716 = pneg %p353
        $region86: #{tpu_custom_call.1} parent=39 // pred_check_branch
          %718 = sbr.rel (%p716) target = $region88
        $region87: #{tpu_custom_call.1} parent=39 // pred_region
          %p719 = scmp.lt.s32.totalorder %s43, 1
          %s720 = scalar_select %p719, %s43, 1
          %s721 = scalar_lea.vmem %s11, %s720
        $region88: #{tpu_custom_call.1} parent=39 // pred_fallthru
          _
        // Predicated region
        $region89: #{tpu_custom_call.1} parent=39 // pred_check
          %p722 = pneg %p379
        $region90: #{tpu_custom_call.1} parent=39 // pred_check_branch
          %724 = sbr.rel (%p722) target = $region92
        $region91: #{tpu_custom_call.1} parent=39 // pred_region
          %p725 = scmp.lt.s32.totalorder %s43, 1
          %s726 = scalar_select %p725, %s43, 1
          %s727 = scalar_lea.vmem %s12, %s726
        $region92: #{tpu_custom_call.1} parent=39 // pred_fallthru
          _
        // Predicated region
        $region93: #{tpu_custom_call.1} parent=39 // pred_check
          %p728 = pneg %p405
        $region94: #{tpu_custom_call.1} parent=39 // pred_check_branch
          %730 = sbr.rel (%p728) target = $region96
        $region95: #{tpu_custom_call.1} parent=39 // pred_region
          %p731 = scmp.lt.s32.totalorder %s43, 1
          %s732 = scalar_select %p731, %s43, 1
          %s733 = scalar_lea.vmem %s13, %s732
        $region96: #{tpu_custom_call.1} parent=39 // pred_fallthru
          _
      $region40: #{tpu_custom_call.1} parent=5 // pred_fallthru
        _
      %p734 = scmp.le.s32.totalorder 1, %s35
      %p735 = scmp.lt.s32.totalorder %s35, 5
      %p736 = pnand %p734, %p735
      %p737 = pneg %p736
      // Predicated region
      $region97: #{tpu_custom_call.1} parent=5 // pred_check
        _
      $region98: #{tpu_custom_call.1} parent=5 // pred_check_branch
        %739 = sbr.rel (%p736) target = $region100
      $region99: #{tpu_custom_call.1} parent=5 // pred_region
        %s740 = ssub.s32 %s35, 1
        %s741 = sand.u32 %s112, 1
        %s742 = scalar_lea.sflag [#allocation4], %s741
        %s743 = sand.u32 %s112, 1
        %s744 = smul.addr %s743, 192
        %s745 = scalar_lea.vmem [#allocation3], %s744
        // Predicated region
        $region101: #{tpu_custom_call.1} parent=99 // pred_check
          %p746 = pneg %p125
        $region102: #{tpu_custom_call.1} parent=99 // pred_check_branch
          %748 = sbr.rel (%p746) target = $region104
        $region103: #{tpu_custom_call.1} parent=99 // pred_region
          %749 = dma.done %s742, 3072
        $region104: #{tpu_custom_call.1} parent=99 // pred_fallthru
          _
        %s750 = sand.u32 %s40, 1
        %s751 = scalar_lea.sflag [#allocation7], %s750
        %s752 = sand.u32 %s268, 1
        %s753 = smul.addr %s752, 128
        %s754 = scalar_lea.vmem [#allocation6], %s753
        // Predicated region
        $region105: #{tpu_custom_call.1} parent=99 // pred_check
          %p755 = pneg %p281
        $region106: #{tpu_custom_call.1} parent=99 // pred_check_branch
          %757 = sbr.rel (%p755) target = $region108
        $region107: #{tpu_custom_call.1} parent=99 // pred_region
          %758 = dma.done %s751, 2048
        $region108: #{tpu_custom_call.1} parent=99 // pred_fallthru
          _
        %s759 = sand.u32 %s40, 1
        %s760 = scalar_lea.sflag [#allocation7], %s759
        %s761 = sand.u32 %s320, 1
        %s762 = smul.addr %s761, 128
        %s763 = scalar_lea.vmem [#allocation8], %s762
        // Predicated region
        $region109: #{tpu_custom_call.1} parent=99 // pred_check
          %p764 = pneg %p333
        $region110: #{tpu_custom_call.1} parent=99 // pred_check_branch
          %766 = sbr.rel (%p764) target = $region112
        $region111: #{tpu_custom_call.1} parent=99 // pred_region
          %767 = dma.done %s760, 2048
        $region112: #{tpu_custom_call.1} parent=99 // pred_fallthru
          _
        %p768 = scmp.lt.s32.totalorder %s44, 1
        %s769 = scalar_select %p768, %s44, 1
        %s770 = smul.addr %s769, 8
        %s771 = scalar_lea.vmem %s0, %s770
        %p772 = pneg %p73
        %p773 = pneg %p70
        %p774 = scmp.lt.s32.totalorder %s44, 1
        %s775 = scalar_select %p774, %s44, 1
        %s776 = scalar_lea.vmem %s1, %s775
        %p777 = pneg %p99
        %p778 = pneg %p96
        %s779 = sand.u32 %s112, 1
        %s780 = scalar_lea.sflag [#allocation4], %s779
        %s781 = sand.u32 %s112, 1
        %s782 = smul.addr %s781, 192
        %s783 = scalar_lea.vmem [#allocation3], %s782
        %p784 = pneg %p125
        %p785 = pneg %p122
        %p786 = scmp.lt.s32.totalorder %s45, 1
        %s787 = scalar_select %p786, %s45, 1
        %s788 = smul.addr %s787, 3
        %s789 = scalar_lea.vmem %s3, %s788
        %p790 = pneg %p151
        %p791 = pneg %p148
        %p792 = scmp.lt.s32.totalorder %s45, 1
        %s793 = scalar_select %p792, %s45, 1
        %s794 = smul.addr %s793, 16
        %s795 = smul.addr %s794, 4
        %s796 = scalar_lea.vmem %s4, %s795
        %p797 = pneg %p177
        %p798 = pneg %p174
        %p799 = scmp.lt.s32.totalorder %s45, 1
        %s800 = scalar_select %p799, %s45, 1
        %s801 = scalar_lea.vmem %s5, %s800
        %p802 = pneg %p203
        %p803 = pneg %p200
        %p804 = scmp.lt.s32.totalorder %s45, 1
        %s805 = scalar_select %p804, %s45, 1
        %s806 = scalar_lea.vmem %s6, %s805
        %p807 = pneg %p229
        %p808 = pneg %p226
        %p809 = scmp.lt.s32.totalorder %s45, 1
        %s810 = scalar_select %p809, %s45, 1
        %s811 = scalar_lea.vmem %s7, %s810
        %p812 = pneg %p255
        %p813 = pneg %p252
        %s814 = sand.u32 %s40, 1
        %s815 = scalar_lea.sflag [#allocation7], %s814
        %s816 = sand.u32 %s268, 1
        %s817 = smul.addr %s816, 128
        %s818 = scalar_lea.vmem [#allocation6], %s817
        %p819 = pneg %p281
        %p820 = pneg %p278
        %p821 = scmp.lt.s32.totalorder %s45, 1
        %s822 = scalar_select %p821, %s45, 1
        %s823 = smul.addr %s822, 2
        %s824 = scalar_lea.vmem %s9, %s823
        %p825 = pneg %p307
        %p826 = pneg %p304
        %s827 = sand.u32 %s40, 1
        %s828 = scalar_lea.sflag [#allocation7], %s827
        %s829 = sand.u32 %s320, 1
        %s830 = smul.addr %s829, 128
        %s831 = scalar_lea.vmem [#allocation8], %s830
        %p832 = pneg %p333
        %p833 = pneg %p330
        %p834 = scmp.lt.s32.totalorder %s45, 1
        %s835 = scalar_select %p834, %s45, 1
        %s836 = scalar_lea.vmem %s11, %s835
        %p837 = pneg %p359
        %p838 = pneg %p356
        %p839 = scmp.lt.s32.totalorder %s45, 1
        %s840 = scalar_select %p839, %s45, 1
        %s841 = scalar_lea.vmem %s12, %s840
        %p842 = pneg %p385
        %p843 = pneg %p382
        %p844 = scmp.lt.s32.totalorder %s45, 1
        %s845 = scalar_select %p844, %s45, 1
        %s846 = scalar_lea.vmem %s13, %s845
        %p847 = pneg %p411
        %p848 = pneg %p408
        %p849 = pneg %p432
        %p850 = pneg %p429
        %p851 = pneg %p453
        %p852 = pneg %p450
        %p853 = pneg %p474
        %p854 = pneg %p471
        %p855 = pneg %p495
        %p856 = pneg %p492
        %p857 = pneg %p516
        %p858 = pneg %p513
        %p859 = pneg %p537
        %p860 = pneg %p534
        %p861 = pneg %p563
        %p862 = pneg %p560
        %s863 = sand.u32 %s550, 1
        %s864 = scalar_lea.sflag [#allocation5], %s863
        %s865 = sand.u32 %s550, 1
        %s866 = scalar_lea.vmem [#allocation9], %s865
        %p867 = scmp.lt.s32.totalorder %s44, 1
        %s868 = scalar_select %p867, %s44, 1
        %s869 = smul.addr %s868, 8
        %s870 = scalar_lea.vmem %s0, %s869
        %p871 = scmp.lt.s32.totalorder %s44, 1
        %s872 = scalar_select %p871, %s44, 1
        %s873 = scalar_lea.vmem %s1, %s872
        %p874 = scmp.lt.s32.totalorder %s45, 1
        %s875 = scalar_select %p874, %s45, 1
        %s876 = smul.addr %s875, 3
        %s877 = scalar_lea.vmem %s3, %s876
        %p878 = scmp.lt.s32.totalorder %s45, 1
        %s879 = scalar_select %p878, %s45, 1
        %s880 = smul.addr %s879, 16
        %s881 = smul.addr %s880, 4
        %s882 = scalar_lea.vmem %s4, %s881
        %p883 = scmp.lt.s32.totalorder %s45, 1
        %s884 = scalar_select %p883, %s45, 1
        %s885 = scalar_lea.vmem %s5, %s884
        %p886 = scmp.lt.s32.totalorder %s45, 1
        %s887 = scalar_select %p886, %s45, 1
        %s888 = scalar_lea.vmem %s6, %s887
        %p889 = scmp.lt.s32.totalorder %s45, 1
        %s890 = scalar_select %p889, %s45, 1
        %s891 = scalar_lea.vmem %s7, %s890
        %p892 = scmp.lt.s32.totalorder %s45, 1
        %s893 = scalar_select %p892, %s45, 1
        %s894 = smul.addr %s893, 2
        %s895 = scalar_lea.vmem %s9, %s894
        %p896 = scmp.lt.s32.totalorder %s45, 1
        %s897 = scalar_select %p896, %s45, 1
        %s898 = scalar_lea.vmem %s11, %s897
        %p899 = scmp.lt.s32.totalorder %s45, 1
        %s900 = scalar_select %p899, %s45, 1
        %s901 = scalar_lea.vmem %s12, %s900
        %p902 = scmp.lt.s32.totalorder %s45, 1
        %s903 = scalar_select %p902, %s45, 1
        %s904 = scalar_lea.vmem %s13, %s903
        %p906 = scmp.eq.s32.totalorder %s45, 0
        // Predicated region
        $region113: #{tpu_custom_call.1} parent=99 // pred_check
          %p907 = pneg %p906
        $region114: #{tpu_custom_call.1} parent=99 // pred_check_branch
          %909 = sbr.rel (%p907) target = $region116
        $region115: #{tpu_custom_call.1} parent=99 // pred_region
          %v910 = vld [vmem:[%s870] sm:$0xff]
          %v911 = vld [vmem:[%s14] sm:$0x1]
          %v912 = vld [vmem:[%s15] sm:$0x1]
          %913 = vadd.xlane.f32.xlu0 %v910
          %v914 = vpop.xlane.xlu0 %913
          %v915 = vrcp.pop 128.0
          %v916 = vmul.f32 %v914, %v915
          %v917 = vsub.f32 %v910, %v916
          %v918 = vmul.f32 %v917, %v917
          %919 = vadd.xlane.f32.xlu0 %v918
          %v920 = vpop.xlane.xlu0 %919
          %v921 = vmul.f32 %v920, %v915
          %v922 = vadd.f32 %v921, 1e-12
          %v923 = vrsqrt.pop %v922
          %v924 = vmul.f32 %v917, %v923
          %v926 = vlaneseq
          %v927 = vshrl.u32 %v926, 7
          %v928 = vsub.s32 0, %v927
          %v929 = vrot.slane %v911, %v928
          %v931 = vmul.f32 %v924, %v929
          %v933 = vlaneseq
          %v934 = vshrl.u32 %v933, 7
          %v935 = vsub.s32 0, %v934
          %v936 = vrot.slane %v912, %v935
          %v938 = vadd.f32 %v931, %v936
          %939 = vst [vmem:[#allocation2] sm:$0xff] %v938
        $region116: #{tpu_custom_call.1} parent=99 // pred_fallthru
          _
        %v940 = vld [vmem:[#allocation2] sm:$0xff]
        %v941 = vpack.c.bf16 %v940, %v940
        %v942 = vld [vmem:[%s745] sm:$0xff]
        %v943 = vld [vmem:[%s745 + $0x8] sm:$0xf]
        %v944 = vld [vmem:[%s745 + $0xc] sm:$0xff]
        %v945 = vld [vmem:[%s745 + $0x14] sm:$0xf]
        %v946 = vld [vmem:[%s745 + $0x18] sm:$0xff]
        %v947 = vld [vmem:[%s745 + $0x20] sm:$0xf]
        %v948 = vld [vmem:[%s745 + $0x24] sm:$0xff]
        %v949 = vld [vmem:[%s745 + $0x2c] sm:$0xf]
        %v950 = vld [vmem:[%s745 + $0x30] sm:$0xff]
        %v951 = vld [vmem:[%s745 + $0x38] sm:$0xf]
        %v952 = vld [vmem:[%s745 + $0x3c] sm:$0xff]
        %v953 = vld [vmem:[%s745 + $0x44] sm:$0xf]
        %v954 = vld [vmem:[%s745 + $0x48] sm:$0xff]
        %v955 = vld [vmem:[%s745 + $0x50] sm:$0xf]
        %v956 = vld [vmem:[%s745 + $0x54] sm:$0xff]
        %v957 = vld [vmem:[%s745 + $0x5c] sm:$0xf]
        %v958 = vld [vmem:[%s745 + $0x60] sm:$0xff]
        %v959 = vld [vmem:[%s745 + $0x68] sm:$0xf]
        %v960 = vld [vmem:[%s745 + $0x6c] sm:$0xff]
        %v961 = vld [vmem:[%s745 + $0x74] sm:$0xf]
        %v962 = vld [vmem:[%s745 + $0x78] sm:$0xff]
        %v963 = vld [vmem:[%s745 + $0x80] sm:$0xf]
        %v964 = vld [vmem:[%s745 + $0x84] sm:$0xff]
        %v965 = vld [vmem:[%s745 + $0x8c] sm:$0xf]
        %v966 = vld [vmem:[%s745 + $0x90] sm:$0xff]
        %v967 = vld [vmem:[%s745 + $0x98] sm:$0xf]
        %v968 = vld [vmem:[%s745 + $0x9c] sm:$0xff]
        %v969 = vld [vmem:[%s745 + $0xa4] sm:$0xf]
        %v970 = vld [vmem:[%s745 + $0xa8] sm:$0xff]
        %v971 = vld [vmem:[%s745 + $0xb0] sm:$0xf]
        %v972 = vld [vmem:[%s745 + $0xb4] sm:$0xff]
        %v973 = vld [vmem:[%s745 + $0xbc] sm:$0xf]
        %v974 = vld [vmem:[%s877] sm:$0x7]
        %v976 = vlaneseq
        %v977 = vshrl.u32 %v976, 7
        %v978 = vsub.s32 0, %v977
        %v979 = vrot.slane %v974, %v978
        %v980 = vlaneseq
        %v981 = vshrl.u32 %v980, 7
        %v982 = vsub.s32 1, %v981
        %v983 = vrot.slane %v974, %v982
        %v984 = vlaneseq
        %v985 = vshrl.u32 %v984, 7
        %v986 = vsub.s32 2, %v985
        %v987 = vrot.slane %v974, %v986
        %v1023 = vunpack.c.l.b16 %v942
        %v1024 = vunpack.c.h.b16 %v942
        %v1025 = vunpack.c.l.b16 %v943
        %v1026 = vunpack.c.l.b16 %v944
        %v1027 = vunpack.c.h.b16 %v944
        %v1028 = vunpack.c.l.b16 %v945
        %v1029 = vunpack.c.l.b16 %v946
        %v1030 = vunpack.c.h.b16 %v946
        %v1031 = vunpack.c.l.b16 %v947
        %v1032 = vunpack.c.l.b16 %v948
        %v1033 = vunpack.c.h.b16 %v948
        %v1034 = vunpack.c.l.b16 %v949
        %v1035 = vunpack.c.l.b16 %v950
        %v1036 = vunpack.c.h.b16 %v950
        %v1037 = vunpack.c.l.b16 %v951
        %v1038 = vunpack.c.l.b16 %v952
        %v1039 = vunpack.c.h.b16 %v952
        %v1040 = vunpack.c.l.b16 %v953
        %v1041 = vunpack.c.l.b16 %v954
        %v1042 = vunpack.c.h.b16 %v954
        %v1043 = vunpack.c.l.b16 %v955
        %v1044 = vunpack.c.l.b16 %v956
        %v1045 = vunpack.c.h.b16 %v956
        %v1046 = vunpack.c.l.b16 %v957
        %v1047 = vunpack.c.l.b16 %v958
        %v1048 = vunpack.c.h.b16 %v958
        %v1049 = vunpack.c.l.b16 %v959
        %v1050 = vunpack.c.l.b16 %v960
        %v1051 = vunpack.c.h.b16 %v960
        %v1052 = vunpack.c.l.b16 %v961
        %v1053 = vunpack.c.l.b16 %v962
        %v1054 = vunpack.c.h.b16 %v962
        %v1055 = vunpack.c.l.b16 %v963
        %v1056 = vunpack.c.l.b16 %v964
        %v1057 = vunpack.c.h.b16 %v964
        %v1058 = vunpack.c.l.b16 %v965
        %v1059 = vunpack.c.l.b16 %v966
        %v1060 = vunpack.c.h.b16 %v966
        %v1061 = vunpack.c.l.b16 %v967
        %v1062 = vunpack.c.l.b16 %v968
        %v1063 = vunpack.c.h.b16 %v968
        %v1064 = vunpack.c.l.b16 %v969
        %v1065 = vunpack.c.l.b16 %v970
        %v1066 = vunpack.c.h.b16 %v970
        %v1067 = vunpack.c.l.b16 %v971
        %v1068 = vunpack.c.l.b16 %v972
        %v1069 = vunpack.c.h.b16 %v972
        %v1070 = vunpack.c.l.b16 %v973
        %v1071 = vpack.c.b16 %v1026, %v1023
        %v1072 = vpack.c.b16 %v1027, %v1024
        %v1073 = vpack.c.b16 %v1028, %v1025
        %v1074 = vpack.c.b16 %v1032, %v1029
        %v1075 = vpack.c.b16 %v1033, %v1030
        %v1076 = vpack.c.b16 %v1034, %v1031
        %v1077 = vpack.c.b16 %v1038, %v1035
        %v1078 = vpack.c.b16 %v1039, %v1036
        %v1079 = vpack.c.b16 %v1040, %v1037
        %v1080 = vpack.c.b16 %v1044, %v1041
        %v1081 = vpack.c.b16 %v1045, %v1042
        %v1082 = vpack.c.b16 %v1046, %v1043
        %v1083 = vpack.c.b16 %v1050, %v1047
        %v1084 = vpack.c.b16 %v1051, %v1048
        %v1085 = vpack.c.b16 %v1052, %v1049
        %v1086 = vpack.c.b16 %v1056, %v1053
        %v1087 = vpack.c.b16 %v1057, %v1054
        %v1088 = vpack.c.b16 %v1058, %v1055
        %v1089 = vpack.c.b16 %v1062, %v1059
        %v1090 = vpack.c.b16 %v1063, %v1060
        %v1091 = vpack.c.b16 %v1064, %v1061
        %v1092 = vpack.c.b16 %v1068, %v1065
        %v1093 = vpack.c.b16 %v1069, %v1066
        %v1094 = vpack.c.b16 %v1070, %v1067
        %1119 = vmatprep.subr.bf16.mxu0 %v1072
        %1120 = vmatpush1.bf16.msra.mxu0 %v1071
        %1121 = vmatprep.subr.bf16.mxu0 %v1075
        %1122 = vmatpush1.bf16.msra.mxu0 %v1074
        %1123 = vmatprep.subr.bf16.mxu0 %v1078
        %1124 = vmatpush1.bf16.msra.mxu0 %v1077
        %1125 = vmatprep.subr.bf16.mxu0 %v1081
        %1126 = vmatpush1.bf16.msra.mxu0 %v1080
        %1127 = vmatprep.subr.bf16.mxu0 %v1084
        %1128 = vmatpush1.bf16.msra.mxu0 %v1083
        %1129 = vmatprep.subr.bf16.mxu0 %v1087
        %1130 = vmatpush1.bf16.msra.mxu0 %v1086
        %1131 = vmatprep.subr.bf16.mxu0 %v1090
        %1132 = vmatpush1.bf16.msra.mxu0 %v1089
        %1133 = vmatprep.subr.bf16.mxu0 %v1093
        %1134 = vmatpush1.bf16.msra.mxu0 %v1092
        %1135 = vmatprep.subr.bf16.mxu0 0
        %1136 = vmatpush1.bf16.msra.mxu0 0
        %1137 = vmatprep.subr.bf16.mxu0 0
        %1138 = vmatpush1.bf16.msra.mxu0 0
        %1139 = vmatprep.subr.bf16.mxu0 0
        %1140 = vmatpush1.bf16.msra.mxu0 0
        %1141 = vmatprep.subr.bf16.mxu0 0
        %1142 = vmatpush1.bf16.msra.mxu0 0
        %1143 = vmatprep.subr.bf16.mxu0 0
        %1144 = vmatpush1.bf16.msra.mxu0 0
        %1145 = vmatprep.subr.bf16.mxu0 0
        %1146 = vmatpush1.bf16.msra.mxu0 0
        %1147 = vmatprep.subr.bf16.mxu0 0
        %1148 = vmatpush1.bf16.msra.mxu0 0
        %1149 = vmatprep.subr.bf16.mxu0 0
        %1150 = vmatpush1.bf16.msra.mxu0 0
        %1151 = vmatprep.mubr.bf16.mxu0 0
        %1152 = vmatmul.mubr.bf16.gmra.mrb[0].mxu0 %v941
        %v1153 = vpop.f32.mrb[0].mxu0
        %v1154 = vadd.f32 %v979, %v1153
        %v1155 = vpop.f32.mrb[0].mxu0
        %v1156 = vadd.f32 %v983, %v1155
        %v1157 = vpop.f32.mrb[0].mxu0
        %v1158 = vpop.f32.mrb[0].mxu0
        %1159 = vdwg.mxu0
        %1160 = vmatprep.subr.bf16.mxu0 0
        %1161 = vmatpush1.bf16.msra.mxu0 %v1073
        %1162 = vmatprep.subr.bf16.mxu0 0
        %1163 = vmatpush1.bf16.msra.mxu0 %v1076
        %1164 = vmatprep.subr.bf16.mxu0 0
        %1165 = vmatpush1.bf16.msra.mxu0 %v1079
        %1166 = vmatprep.subr.bf16.mxu0 0
        %1167 = vmatpush1.bf16.msra.mxu0 %v1082
        %1168 = vmatprep.subr.bf16.mxu0 0
        %1169 = vmatpush1.bf16.msra.mxu0 %v1085
        %1170 = vmatprep.subr.bf16.mxu0 0
        %1171 = vmatpush1.bf16.msra.mxu0 %v1088
        %1172 = vmatprep.subr.bf16.mxu0 0
        %1173 = vmatpush1.bf16.msra.mxu0 %v1091
        %1174 = vmatprep.subr.bf16.mxu0 0
        %1175 = vmatpush1.bf16.msra.mxu0 %v1094
        %1176 = vmatprep.subr.bf16.mxu0 0
        %1177 = vmatpush1.bf16.msra.mxu0 0
        %1178 = vmatprep.subr.bf16.mxu0 0
        %1179 = vmatpush1.bf16.msra.mxu0 0
        %1180 = vmatprep.subr.bf16.mxu0 0
        %1181 = vmatpush1.bf16.msra.mxu0 0
        %1182 = vmatprep.subr.bf16.mxu0 0
        %1183 = vmatpush1.bf16.msra.mxu0 0
        %1184 = vmatprep.subr.bf16.mxu0 0
        %1185 = vmatpush1.bf16.msra.mxu0 0
        %1186 = vmatprep.subr.bf16.mxu0 0
        %1187 = vmatpush1.bf16.msra.mxu0 0
        %1188 = vmatprep.subr.bf16.mxu0 0
        %1189 = vmatpush1.bf16.msra.mxu0 0
        %1190 = vmatprep.subr.bf16.mxu0 0
        %1191 = vmatpush1.bf16.msra.mxu0 0
        %1192 = vmatprep.mubr.bf16.mxu0 0
        %1193 = vmatmul.mubr.bf16.gmra.mrb[0].mxu0 %v941
        %v1194 = vpop.f32.mrb[0].mxu0
        %v1195 = vadd.f32 %v987, %v1194
        %v1196 = vpop.f32.mrb[0].mxu0
        %v1197 = vpop.f32.mrb[0].mxu0
        %v1198 = vpop.f32.mrb[0].mxu0
        %1199 = vdwg.mxu0
        %v1200 = vld [vmem:[%s873] sm:$0x1]
        %vm1201 = vcmask 523264
        %v1203 = vsel %vm1201, %v1154, 0
        %v1206 = vsel %vm1201, %v1156, 0
        %1208 = vmatprep.subr.mxu0 0.0
        %1209 = vmatpush1.xpose.msra.mxu0 %v1206
        %1210 = vmatprep.subr.mxu0 0.0
        %1211 = vmatpush1.xpose.msra.mxu0 0.0
        %1212 = vmatprep.subr.mxu0 0.0
        %1213 = vmatpush1.xpose.msra.mxu0 0.0
        %1214 = vmatprep.subr.mxu0 0.0
        %1215 = vmatpush1.xpose.msra.mxu0 0.0
        %1216 = vmatprep.subr.mxu0 0.0
        %1217 = vmatpush1.xpose.msra.mxu0 0.0
        %1218 = vmatprep.subr.mxu0 0.0
        %1219 = vmatpush1.xpose.msra.mxu0 0.0
        %1220 = vmatprep.subr.mxu0 0.0
        %1221 = vmatpush1.xpose.msra.mxu0 0.0
        %1222 = vmatprep.subr.mxu0 0.0
        %1223 = vmatpush1.xpose.msra.mxu0 0.0
        %1224 = vmatprep.subr.mxu0 0.0
        %1225 = vmatpush1.xpose.msra.mxu0 0.0
        %1226 = vmatprep.subr.mxu0 0.0
        %1227 = vmatpush1.xpose.msra.mxu0 0.0
        %1228 = vmatprep.subr.mxu0 0.0
        %1229 = vmatpush1.xpose.msra.mxu0 0.0
        %1230 = vmatprep.subr.mxu0 0.0
        %1231 = vmatpush1.xpose.msra.mxu0 0.0
        %1232 = vmatprep.subr.mxu0 0.0
        %1233 = vmatpush1.xpose.msra.mxu0 0.0
        %1234 = vmatprep.subr.mxu0 0.0
        %1235 = vmatpush1.xpose.msra.mxu0 0.0
        %1236 = vmatprep.subr.mxu0 0.0
        %1237 = vmatpush1.xpose.msra.mxu0 0.0
        %1238 = vmatprep.subr.mxu0 0.0
        %1239 = vmatpush1.xpose.msra.mxu0 0.0
        %1240 = vmatprep.subr.mxu0 0.0
        %1241 = vmatpush1.xpose.msra.mxu0 0.0
        %1242 = vmatprep.subr.mxu0 0.0
        %1243 = vmatpush1.xpose.msra.mxu0 0.0
        %1244 = vmatprep.subr.mxu0 0.0
        %1245 = vmatpush1.xpose.msra.mxu0 0.0
        %1246 = vmatprep.subr.mxu0 0.0
        %1247 = vmatpush1.xpose.msra.mxu0 0.0
        %1248 = vmatprep.subr.mxu0 0.0
        %1249 = vmatpush1.xpose.msra.mxu0 0.0
        %1250 = vmatprep.subr.mxu0 0.0
        %1251 = vmatpush1.xpose.msra.mxu0 0.0
        %1252 = vmatprep.subr.mxu0 0.0
        %1253 = vmatpush1.xpose.msra.mxu0 0.0
        %1254 = vmatprep.subr.mxu0 0.0
        %1255 = vmatpush1.xpose.msra.mxu0 0.0
        %1256 = vmatprep.subr.mxu0 0.0
        %1257 = vmatpush1.xpose.msra.mxu0 0.0
        %1258 = vmatprep.subr.mxu0 0.0
        %1259 = vmatpush1.xpose.msra.mxu0 0.0
        %1260 = vmatprep.subr.mxu0 0.0
        %1261 = vmatpush1.xpose.msra.mxu0 0.0
        %1262 = vmatprep.subr.mxu0 0.0
        %1263 = vmatpush1.xpose.msra.mxu0 0.0
        %1264 = vmatprep.subr.mxu0 0.0
        %1265 = vmatpush1.xpose.msra.mxu0 0.0
        %1266 = vmatprep.subr.mxu0 0.0
        %1267 = vmatpush1.xpose.msra.mxu0 0.0
        %1268 = vmatprep.subr.mxu0 0.0
        %1269 = vmatpush1.xpose.msra.mxu0 0.0
        %1270 = vmatprep.subr.mxu0 0.0
        %1271 = vmatpush1.xpose.msra.mxu0 0.0
        %1272 = vmatprep.mubr.f32.mxu0 0.0
        %1273 = vmatmul.mubr.f32.gmra.mrb[0].mxu0 %v1203
        %v1274 = vpop.f32.mrb[0].mxu0
        %v1275 = vadd.f32 0.0, %v1274
        %v1276 = vpop.f32.mrb[0].mxu0
        %1277 = vdwg.mxu0
        %v1278 = vmul.f32 %v1275, 0.125
        %v1280 = vlaneseq
        %v1281 = vshrl.u32 %v1280, 7
        %v1282 = vsub.s32 0, %v1281
        %v1283 = vrot.slane %v1200, %v1282
        %v1285 = vadd.f32 %v1278, %v1283
        %vm1286 = vcmask 64512
        %v1287 = vsel %vm1286, %v1285, -inf
        %1288 = vmax.xlane.f32.xlu0 %v1287
        %v1289 = vpop.xlane.xlu0 %1288
        %v1290 = vsub.f32 %v1285, %v1289
        %v1291 = vmul.f32 %v1290, 1.442695
        %v1292 = vpow.pop %v1291
        %v1293 = vsel %vm1286, %v1292, 0.0
        %1294 = vadd.xlane.f32.xlu0 %v1293
        %v1295 = vpop.xlane.xlu0 %1294
        %v1296 = vrcp.pop %v1295
        %v1297 = vmul.f32 %v1292, %v1296
        %v1299 = vsel %vm1286, %v1297, 0
        %1301 = vmatprep.subr.mxu0 0.0
        %1302 = vmatpush1.msra.mxu0 %v1195
        %1303 = vmatprep.subr.mxu0 0.0
        %1304 = vmatpush1.msra.mxu0 0.0
        %1305 = vmatprep.subr.mxu0 0.0
        %1306 = vmatpush1.msra.mxu0 0.0
        %1307 = vmatprep.subr.mxu0 0.0
        %1308 = vmatpush1.msra.mxu0 0.0
        %1309 = vmatprep.subr.mxu0 0.0
        %1310 = vmatpush1.msra.mxu0 0.0
        %1311 = vmatprep.subr.mxu0 0.0
        %1312 = vmatpush1.msra.mxu0 0.0
        %1313 = vmatprep.subr.mxu0 0.0
        %1314 = vmatpush1.msra.mxu0 0.0
        %1315 = vmatprep.subr.mxu0 0.0
        %1316 = vmatpush1.msra.mxu0 0.0
        %1317 = vmatprep.subr.mxu0 0.0
        %1318 = vmatpush1.msra.mxu0 0.0
        %1319 = vmatprep.subr.mxu0 0.0
        %1320 = vmatpush1.msra.mxu0 0.0
        %1321 = vmatprep.subr.mxu0 0.0
        %1322 = vmatpush1.msra.mxu0 0.0
        %1323 = vmatprep.subr.mxu0 0.0
        %1324 = vmatpush1.msra.mxu0 0.0
        %1325 = vmatprep.subr.mxu0 0.0
        %1326 = vmatpush1.msra.mxu0 0.0
        %1327 = vmatprep.subr.mxu0 0.0
        %1328 = vmatpush1.msra.mxu0 0.0
        %1329 = vmatprep.subr.mxu0 0.0
        %1330 = vmatpush1.msra.mxu0 0.0
        %1331 = vmatprep.subr.mxu0 0.0
        %1332 = vmatpush1.msra.mxu0 0.0
        %1333 = vmatprep.subr.mxu0 0.0
        %1334 = vmatpush1.msra.mxu0 0.0
        %1335 = vmatprep.subr.mxu0 0.0
        %1336 = vmatpush1.msra.mxu0 0.0
        %1337 = vmatprep.subr.mxu0 0.0
        %1338 = vmatpush1.msra.mxu0 0.0
        %1339 = vmatprep.subr.mxu0 0.0
        %1340 = vmatpush1.msra.mxu0 0.0
        %1341 = vmatprep.subr.mxu0 0.0
        %1342 = vmatpush1.msra.mxu0 0.0
        %1343 = vmatprep.subr.mxu0 0.0
        %1344 = vmatpush1.msra.mxu0 0.0
        %1345 = vmatprep.subr.mxu0 0.0
        %1346 = vmatpush1.msra.mxu0 0.0
        %1347 = vmatprep.subr.mxu0 0.0
        %1348 = vmatpush1.msra.mxu0 0.0
        %1349 = vmatprep.subr.mxu0 0.0
        %1350 = vmatpush1.msra.mxu0 0.0
        %1351 = vmatprep.subr.mxu0 0.0
        %1352 = vmatpush1.msra.mxu0 0.0
        %1353 = vmatprep.subr.mxu0 0.0
        %1354 = vmatpush1.msra.mxu0 0.0
        %1355 = vmatprep.subr.mxu0 0.0
        %1356 = vmatpush1.msra.mxu0 0.0
        %1357 = vmatprep.subr.mxu0 0.0
        %1358 = vmatpush1.msra.mxu0 0.0
        %1359 = vmatprep.subr.mxu0 0.0
        %1360 = vmatpush1.msra.mxu0 0.0
        %1361 = vmatprep.subr.mxu0 0.0
        %1362 = vmatpush1.msra.mxu0 0.0
        %1363 = vmatprep.subr.mxu0 0.0
        %1364 = vmatpush1.msra.mxu0 0.0
        %1365 = vmatprep.mubr.f32.mxu0 0.0
        %1366 = vmatmul.mubr.f32.gmra.mrb[0].mxu0 %v1299
        %v1367 = vpop.f32.mrb[0].mxu0
        %v1368 = vadd.f32 0.0, %v1367
        %v1369 = vpop.f32.mrb[0].mxu0
        %1370 = vdwg.mxu0
        %1371 = vrot.lane.b32.xlu0 %v1154, 64
        %v1372 = vpop.permute.xlu0 %1371
        %1373 = vrot.lane.b32.xlu0 %v1156, 64
        %v1374 = vpop.permute.xlu0 %1373
        %v1375 = vsel %vm1201, %v1372, 0
        %v1377 = vsel %vm1201, %v1374, 0
        %1379 = vmatprep.subr.mxu0 0.0
        %1380 = vmatpush1.xpose.msra.mxu0 %v1377
        %1381 = vmatprep.subr.mxu0 0.0
        %1382 = vmatpush1.xpose.msra.mxu0 0.0
        %1383 = vmatprep.subr.mxu0 0.0
        %1384 = vmatpush1.xpose.msra.mxu0 0.0
        %1385 = vmatprep.subr.mxu0 0.0
        %1386 = vmatpush1.xpose.msra.mxu0 0.0
        %1387 = vmatprep.subr.mxu0 0.0
        %1388 = vmatpush1.xpose.msra.mxu0 0.0
        %1389 = vmatprep.subr.mxu0 0.0
        %1390 = vmatpush1.xpose.msra.mxu0 0.0
        %1391 = vmatprep.subr.mxu0 0.0
        %1392 = vmatpush1.xpose.msra.mxu0 0.0
        %1393 = vmatprep.subr.mxu0 0.0
        %1394 = vmatpush1.xpose.msra.mxu0 0.0
        %1395 = vmatprep.subr.mxu0 0.0
        %1396 = vmatpush1.xpose.msra.mxu0 0.0
        %1397 = vmatprep.subr.mxu0 0.0
        %1398 = vmatpush1.xpose.msra.mxu0 0.0
        %1399 = vmatprep.subr.mxu0 0.0
        %1400 = vmatpush1.xpose.msra.mxu0 0.0
        %1401 = vmatprep.subr.mxu0 0.0
        %1402 = vmatpush1.xpose.msra.mxu0 0.0
        %1403 = vmatprep.subr.mxu0 0.0
        %1404 = vmatpush1.xpose.msra.mxu0 0.0
        %1405 = vmatprep.subr.mxu0 0.0
        %1406 = vmatpush1.xpose.msra.mxu0 0.0
        %1407 = vmatprep.subr.mxu0 0.0
        %1408 = vmatpush1.xpose.msra.mxu0 0.0
        %1409 = vmatprep.subr.mxu0 0.0
        %1410 = vmatpush1.xpose.msra.mxu0 0.0
        %1411 = vmatprep.subr.mxu0 0.0
        %1412 = vmatpush1.xpose.msra.mxu0 0.0
        %1413 = vmatprep.subr.mxu0 0.0
        %1414 = vmatpush1.xpose.msra.mxu0 0.0
        %1415 = vmatprep.subr.mxu0 0.0
        %1416 = vmatpush1.xpose.msra.mxu0 0.0
        %1417 = vmatprep.subr.mxu0 0.0
        %1418 = vmatpush1.xpose.msra.mxu0 0.0
        %1419 = vmatprep.subr.mxu0 0.0
        %1420 = vmatpush1.xpose.msra.mxu0 0.0
        %1421 = vmatprep.subr.mxu0 0.0
        %1422 = vmatpush1.xpose.msra.mxu0 0.0
        %1423 = vmatprep.subr.mxu0 0.0
        %1424 = vmatpush1.xpose.msra.mxu0 0.0
        %1425 = vmatprep.subr.mxu0 0.0
        %1426 = vmatpush1.xpose.msra.mxu0 0.0
        %1427 = vmatprep.subr.mxu0 0.0
        %1428 = vmatpush1.xpose.msra.mxu0 0.0
        %1429 = vmatprep.subr.mxu0 0.0
        %1430 = vmatpush1.xpose.msra.mxu0 0.0
        %1431 = vmatprep.subr.mxu0 0.0
        %1432 = vmatpush1.xpose.msra.mxu0 0.0
        %1433 = vmatprep.subr.mxu0 0.0
        %1434 = vmatpush1.xpose.msra.mxu0 0.0
        %1435 = vmatprep.subr.mxu0 0.0
        %1436 = vmatpush1.xpose.msra.mxu0 0.0
        %1437 = vmatprep.subr.mxu0 0.0
        %1438 = vmatpush1.xpose.msra.mxu0 0.0
        %1439 = vmatprep.subr.mxu0 0.0
        %1440 = vmatpush1.xpose.msra.mxu0 0.0
        %1441 = vmatprep.subr.mxu0 0.0
        %1442 = vmatpush1.xpose.msra.mxu0 0.0
        %1443 = vmatprep.mubr.f32.mxu0 0.0
        %1444 = vmatmul.mubr.f32.gmra.mrb[0].mxu0 %v1375
        %v1445 = vpop.f32.mrb[0].mxu0
        %v1446 = vadd.f32 0.0, %v1445
        %v1447 = vpop.f32.mrb[0].mxu0
        %1448 = vdwg.mxu0
        %v1449 = vmul.f32 %v1446, 0.125
        %v1450 = vadd.f32 %v1449, %v1283
        %v1451 = vsel %vm1286, %v1450, -inf
        %1452 = vmax.xlane.f32.xlu0 %v1451
        %v1453 = vpop.xlane.xlu0 %1452
        %v1454 = vsub.f32 %v1450, %v1453
        %v1455 = vmul.f32 %v1454, 1.442695
        %v1456 = vpow.pop %v1455
        %v1457 = vsel %vm1286, %v1456, 0.0
        %1458 = vadd.xlane.f32.xlu0 %v1457
        %v1459 = vpop.xlane.xlu0 %1458
        %v1460 = vrcp.pop %v1459
        %v1461 = vmul.f32 %v1456, %v1460
        %1463 = vrot.lane.b32.xlu0 %v1195, 64
        %v1464 = vpop.permute.xlu0 %1463
        %v1467 = vsel %vm1286, %v1461, 0
        %1469 = vmatprep.subr.mxu0 0.0
        %1470 = vmatpush1.msra.mxu0 %v1464
        %1471 = vmatprep.subr.mxu0 0.0
        %1472 = vmatpush1.msra.mxu0 0.0
        %1473 = vmatprep.subr.mxu0 0.0
        %1474 = vmatpush1.msra.mxu0 0.0
        %1475 = vmatprep.subr.mxu0 0.0
        %1476 = vmatpush1.msra.mxu0 0.0
        %1477 = vmatprep.subr.mxu0 0.0
        %1478 = vmatpush1.msra.mxu0 0.0
        %1479 = vmatprep.subr.mxu0 0.0
        %1480 = vmatpush1.msra.mxu0 0.0
        %1481 = vmatprep.subr.mxu0 0.0
        %1482 = vmatpush1.msra.mxu0 0.0
        %1483 = vmatprep.subr.mxu0 0.0
        %1484 = vmatpush1.msra.mxu0 0.0
        %1485 = vmatprep.subr.mxu0 0.0
        %1486 = vmatpush1.msra.mxu0 0.0
        %1487 = vmatprep.subr.mxu0 0.0
        %1488 = vmatpush1.msra.mxu0 0.0
        %1489 = vmatprep.subr.mxu0 0.0
        %1490 = vmatpush1.msra.mxu0 0.0
        %1491 = vmatprep.subr.mxu0 0.0
        %1492 = vmatpush1.msra.mxu0 0.0
        %1493 = vmatprep.subr.mxu0 0.0
        %1494 = vmatpush1.msra.mxu0 0.0
        %1495 = vmatprep.subr.mxu0 0.0
        %1496 = vmatpush1.msra.mxu0 0.0
        %1497 = vmatprep.subr.mxu0 0.0
        %1498 = vmatpush1.msra.mxu0 0.0
        %1499 = vmatprep.subr.mxu0 0.0
        %1500 = vmatpush1.msra.mxu0 0.0
        %1501 = vmatprep.subr.mxu0 0.0
        %1502 = vmatpush1.msra.mxu0 0.0
        %1503 = vmatprep.subr.mxu0 0.0
        %1504 = vmatpush1.msra.mxu0 0.0
        %1505 = vmatprep.subr.mxu0 0.0
        %1506 = vmatpush1.msra.mxu0 0.0
        %1507 = vmatprep.subr.mxu0 0.0
        %1508 = vmatpush1.msra.mxu0 0.0
        %1509 = vmatprep.subr.mxu0 0.0
        %1510 = vmatpush1.msra.mxu0 0.0
        %1511 = vmatprep.subr.mxu0 0.0
        %1512 = vmatpush1.msra.mxu0 0.0
        %1513 = vmatprep.subr.mxu0 0.0
        %1514 = vmatpush1.msra.mxu0 0.0
        %1515 = vmatprep.subr.mxu0 0.0
        %1516 = vmatpush1.msra.mxu0 0.0
        %1517 = vmatprep.subr.mxu0 0.0
        %1518 = vmatpush1.msra.mxu0 0.0
        %1519 = vmatprep.subr.mxu0 0.0
        %1520 = vmatpush1.msra.mxu0 0.0
        %1521 = vmatprep.subr.mxu0 0.0
        %1522 = vmatpush1.msra.mxu0 0.0
        %1523 = vmatprep.subr.mxu0 0.0
        %1524 = vmatpush1.msra.mxu0 0.0
        %1525 = vmatprep.subr.mxu0 0.0
        %1526 = vmatpush1.msra.mxu0 0.0
        %1527 = vmatprep.subr.mxu0 0.0
        %1528 = vmatpush1.msra.mxu0 0.0
        %1529 = vmatprep.subr.mxu0 0.0
        %1530 = vmatpush1.msra.mxu0 0.0
        %1531 = vmatprep.subr.mxu0 0.0
        %1532 = vmatpush1.msra.mxu0 0.0
        %1533 = vmatprep.mubr.f32.mxu0 0.0
        %1534 = vmatmul.mubr.f32.gmra.mrb[0].mxu0 %v1467
        %v1535 = vpop.f32.mrb[0].mxu0
        %v1536 = vadd.f32 0.0, %v1535
        %v1537 = vpop.f32.mrb[0].mxu0
        %1538 = vdwg.mxu0
        %1540 = vrot.lane.b32.xlu0 %v1536, 64
        %v1541 = vpop.permute.xlu0 %1540
        %v1543 = vsel %vm1201, %v1368, %v1541
        %v1544 = vpack.c.bf16 %v1543, %v1543
        %v1545 = vld [vmem:[%s882] sm:$0xf]
        %v1546 = vld [vmem:[%s882 + $0x4] sm:$0xf]
        %v1547 = vld [vmem:[%s882 + $0x8] sm:$0xf]
        %v1548 = vld [vmem:[%s882 + $0xc] sm:$0xf]
        %v1549 = vld [vmem:[%s882 + $0x10] sm:$0xf]
        %v1550 = vld [vmem:[%s882 + $0x14] sm:$0xf]
        %v1551 = vld [vmem:[%s882 + $0x18] sm:$0xf]
        %v1552 = vld [vmem:[%s882 + $0x1c] sm:$0xf]
        %v1553 = vld [vmem:[%s882 + $0x20] sm:$0xf]
        %v1554 = vld [vmem:[%s882 + $0x24] sm:$0xf]
        %v1555 = vld [vmem:[%s882 + $0x28] sm:$0xf]
        %v1556 = vld [vmem:[%s882 + $0x2c] sm:$0xf]
        %v1557 = vld [vmem:[%s882 + $0x30] sm:$0xf]
        %v1558 = vld [vmem:[%s882 + $0x34] sm:$0xf]
        %v1559 = vld [vmem:[%s882 + $0x38] sm:$0xf]
        %v1560 = vld [vmem:[%s882 + $0x3c] sm:$0xf]
        %v1561 = vld [vmem:[%s885] sm:$0x1]
        %v1563 = vlaneseq
        %v1564 = vshrl.u32 %v1563, 7
        %v1565 = vsub.s32 0, %v1564
        %v1566 = vrot.slane %v1561, %v1565
        %v1584 = vunpack.c.l.b16 %v1545
        %v1585 = vunpack.c.l.b16 %v1546
        %v1586 = vunpack.c.l.b16 %v1547
        %v1587 = vunpack.c.l.b16 %v1548
        %v1588 = vunpack.c.l.b16 %v1549
        %v1589 = vunpack.c.l.b16 %v1550
        %v1590 = vunpack.c.l.b16 %v1551
        %v1591 = vunpack.c.l.b16 %v1552
        %v1592 = vunpack.c.l.b16 %v1553
        %v1593 = vunpack.c.l.b16 %v1554
        %v1594 = vunpack.c.l.b16 %v1555
        %v1595 = vunpack.c.l.b16 %v1556
        %v1596 = vunpack.c.l.b16 %v1557
        %v1597 = vunpack.c.l.b16 %v1558
        %v1598 = vunpack.c.l.b16 %v1559
        %v1599 = vunpack.c.l.b16 %v1560
        %v1600 = vpack.c.b16 %v1585, %v1584
        %v1601 = vpack.c.b16 %v1587, %v1586
        %v1602 = vpack.c.b16 %v1589, %v1588
        %v1603 = vpack.c.b16 %v1591, %v1590
        %v1604 = vpack.c.b16 %v1593, %v1592
        %v1605 = vpack.c.b16 %v1595, %v1594
        %v1606 = vpack.c.b16 %v1597, %v1596
        %v1607 = vpack.c.b16 %v1599, %v1598
        %1616 = vmatprep.subr.bf16.mxu0 0
        %1617 = vmatpush1.bf16.msra.mxu0 %v1600
        %1618 = vmatprep.subr.bf16.mxu0 0
        %1619 = vmatpush1.bf16.msra.mxu0 %v1601
        %1620 = vmatprep.subr.bf16.mxu0 0
        %1621 = vmatpush1.bf16.msra.mxu0 %v1602
        %1622 = vmatprep.subr.bf16.mxu0 0
        %1623 = vmatpush1.bf16.msra.mxu0 %v1603
        %1624 = vmatprep.subr.bf16.mxu0 0
        %1625 = vmatpush1.bf16.msra.mxu0 %v1604
        %1626 = vmatprep.subr.bf16.mxu0 0
        %1627 = vmatpush1.bf16.msra.mxu0 %v1605
        %1628 = vmatprep.subr.bf16.mxu0 0
        %1629 = vmatpush1.bf16.msra.mxu0 %v1606
        %1630 = vmatprep.subr.bf16.mxu0 0
        %1631 = vmatpush1.bf16.msra.mxu0 %v1607
        %1632 = vmatprep.subr.bf16.mxu0 0
        %1633 = vmatpush1.bf16.msra.mxu0 0
        %1634 = vmatprep.subr.bf16.mxu0 0
        %1635 = vmatpush1.bf16.msra.mxu0 0
        %1636 = vmatprep.subr.bf16.mxu0 0
        %1637 = vmatpush1.bf16.msra.mxu0 0
        %1638 = vmatprep.subr.bf16.mxu0 0
        %1639 = vmatpush1.bf16.msra.mxu0 0
        %1640 = vmatprep.subr.bf16.mxu0 0
        %1641 = vmatpush1.bf16.msra.mxu0 0
        %1642 = vmatprep.subr.bf16.mxu0 0
        %1643 = vmatpush1.bf16.msra.mxu0 0
        %1644 = vmatprep.subr.bf16.mxu0 0
        %1645 = vmatpush1.bf16.msra.mxu0 0
        %1646 = vmatprep.subr.bf16.mxu0 0
        %1647 = vmatpush1.bf16.msra.mxu0 0
        %1648 = vmatprep.mubr.bf16.mxu0 0
        %1649 = vmatmul.mubr.bf16.gmra.mrb[0].mxu0 %v1544
        %v1650 = vpop.f32.mrb[0].mxu0
        %v1651 = vadd.f32 %v1566, %v1650
        %v1652 = vpop.f32.mrb[0].mxu0
        %v1653 = vpop.f32.mrb[0].mxu0
        %v1654 = vpop.f32.mrb[0].mxu0
        %1655 = vdwg.mxu0
        %v1656 = vadd.f32 %v1651, %v940
        %v1657 = vld [vmem:[%s888] sm:$0x1]
        %v1658 = vld [vmem:[%s891] sm:$0x1]
        %1659 = vadd.xlane.f32.xlu0 %v1656
        %v1660 = vpop.xlane.xlu0 %1659
        %v1661 = vrcp.pop 128.0
        %v1662 = vmul.f32 %v1660, %v1661
        %v1663 = vsub.f32 %v1656, %v1662
        %v1664 = vmul.f32 %v1663, %v1663
        %1665 = vadd.xlane.f32.xlu0 %v1664
        %v1666 = vpop.xlane.xlu0 %1665
        %v1667 = vmul.f32 %v1666, %v1661
        %v1668 = vadd.f32 %v1667, 1e-12
        %v1669 = vrsqrt.pop %v1668
        %v1670 = vmul.f32 %v1663, %v1669
        %v1672 = vlaneseq
        %v1673 = vshrl.u32 %v1672, 7
        %v1674 = vsub.s32 0, %v1673
        %v1675 = vrot.slane %v1657, %v1674
        %v1677 = vmul.f32 %v1670, %v1675
        %v1679 = vlaneseq
        %v1680 = vshrl.u32 %v1679, 7
        %v1681 = vsub.s32 0, %v1680
        %v1682 = vrot.slane %v1658, %v1681
        %v1684 = vadd.f32 %v1677, %v1682
        %v1685 = vpack.c.bf16 %v1684, %v1684
        %v1686 = vld [vmem:[%s754] sm:$0xff]
        %v1687 = vld [vmem:[%s754 + $0x8] sm:$0xff]
        %v1688 = vld [vmem:[%s754 + $0x10] sm:$0xff]
        %v1689 = vld [vmem:[%s754 + $0x18] sm:$0xff]
        %v1690 = vld [vmem:[%s754 + $0x20] sm:$0xff]
        %v1691 = vld [vmem:[%s754 + $0x28] sm:$0xff]
        %v1692 = vld [vmem:[%s754 + $0x30] sm:$0xff]
        %v1693 = vld [vmem:[%s754 + $0x38] sm:$0xff]
        %v1694 = vld [vmem:[%s754 + $0x40] sm:$0xff]
        %v1695 = vld [vmem:[%s754 + $0x48] sm:$0xff]
        %v1696 = vld [vmem:[%s754 + $0x50] sm:$0xff]
        %v1697 = vld [vmem:[%s754 + $0x58] sm:$0xff]
        %v1698 = vld [vmem:[%s754 + $0x60] sm:$0xff]
        %v1699 = vld [vmem:[%s754 + $0x68] sm:$0xff]
        %v1700 = vld [vmem:[%s754 + $0x70] sm:$0xff]
        %v1701 = vld [vmem:[%s754 + $0x78] sm:$0xff]
        %v1702 = vld [vmem:[%s895] sm:$0x3]
        %v1704 = vlaneseq
        %v1705 = vshrl.u32 %v1704, 7
        %v1706 = vsub.s32 0, %v1705
        %v1707 = vrot.slane %v1702, %v1706
        %v1708 = vlaneseq
        %v1709 = vshrl.u32 %v1708, 7
        %v1710 = vsub.s32 1, %v1709
        %v1711 = vrot.slane %v1702, %v1710
        %v1730 = vunpack.c.l.b16 %v1686
        %v1731 = vunpack.c.h.b16 %v1686
        %v1732 = vunpack.c.l.b16 %v1687
        %v1733 = vunpack.c.h.b16 %v1687
        %v1734 = vunpack.c.l.b16 %v1688
        %v1735 = vunpack.c.h.b16 %v1688
        %v1736 = vunpack.c.l.b16 %v1689
        %v1737 = vunpack.c.h.b16 %v1689
        %v1738 = vunpack.c.l.b16 %v1690
        %v1739 = vunpack.c.h.b16 %v1690
        %v1740 = vunpack.c.l.b16 %v1691
        %v1741 = vunpack.c.h.b16 %v1691
        %v1742 = vunpack.c.l.b16 %v1692
        %v1743 = vunpack.c.h.b16 %v1692
        %v1744 = vunpack.c.l.b16 %v1693
        %v1745 = vunpack.c.h.b16 %v1693
        %v1746 = vunpack.c.l.b16 %v1694
        %v1747 = vunpack.c.h.b16 %v1694
        %v1748 = vunpack.c.l.b16 %v1695
        %v1749 = vunpack.c.h.b16 %v1695
        %v1750 = vunpack.c.l.b16 %v1696
        %v1751 = vunpack.c.h.b16 %v1696
        %v1752 = vunpack.c.l.b16 %v1697
        %v1753 = vunpack.c.h.b16 %v1697
        %v1754 = vunpack.c.l.b16 %v1698
        %v1755 = vunpack.c.h.b16 %v1698
        %v1756 = vunpack.c.l.b16 %v1699
        %v1757 = vunpack.c.h.b16 %v1699
        %v1758 = vunpack.c.l.b16 %v1700
        %v1759 = vunpack.c.h.b16 %v1700
        %v1760 = vunpack.c.l.b16 %v1701
        %v1761 = vunpack.c.h.b16 %v1701
        %v1762 = vpack.c.b16 %v1732, %v1730
        %v1763 = vpack.c.b16 %v1733, %v1731
        %v1764 = vpack.c.b16 %v1736, %v1734
        %v1765 = vpack.c.b16 %v1737, %v1735
        %v1766 = vpack.c.b16 %v1740, %v1738
        %v1767 = vpack.c.b16 %v1741, %v1739
        %v1768 = vpack.c.b16 %v1744, %v1742
        %v1769 = vpack.c.b16 %v1745, %v1743
        %v1770 = vpack.c.b16 %v1748, %v1746
        %v1771 = vpack.c.b16 %v1749, %v1747
        %v1772 = vpack.c.b16 %v1752, %v1750
        %v1773 = vpack.c.b16 %v1753, %v1751
        %v1774 = vpack.c.b16 %v1756, %v1754
        %v1775 = vpack.c.b16 %v1757, %v1755
        %v1776 = vpack.c.b16 %v1760, %v1758
        %v1777 = vpack.c.b16 %v1761, %v1759
        %1794 = vmatprep.subr.bf16.mxu0 %v1763
        %1795 = vmatpush1.bf16.msra.mxu0 %v1762
        %1796 = vmatprep.subr.bf16.mxu0 %v1765
        %1797 = vmatpush1.bf16.msra.mxu0 %v1764
        %1798 = vmatprep.subr.bf16.mxu0 %v1767
        %1799 = vmatpush1.bf16.msra.mxu0 %v1766
        %1800 = vmatprep.subr.bf16.mxu0 %v1769
        %1801 = vmatpush1.bf16.msra.mxu0 %v1768
        %1802 = vmatprep.subr.bf16.mxu0 %v1771
        %1803 = vmatpush1.bf16.msra.mxu0 %v1770
        %1804 = vmatprep.subr.bf16.mxu0 %v1773
        %1805 = vmatpush1.bf16.msra.mxu0 %v1772
        %1806 = vmatprep.subr.bf16.mxu0 %v1775
        %1807 = vmatpush1.bf16.msra.mxu0 %v1774
        %1808 = vmatprep.subr.bf16.mxu0 %v1777
        %1809 = vmatpush1.bf16.msra.mxu0 %v1776
        %1810 = vmatprep.subr.bf16.mxu0 0
        %1811 = vmatpush1.bf16.msra.mxu0 0
        %1812 = vmatprep.subr.bf16.mxu0 0
        %1813 = vmatpush1.bf16.msra.mxu0 0
        %1814 = vmatprep.subr.bf16.mxu0 0
        %1815 = vmatpush1.bf16.msra.mxu0 0
        %1816 = vmatprep.subr.bf16.mxu0 0
        %1817 = vmatpush1.bf16.msra.mxu0 0
        %1818 = vmatprep.subr.bf16.mxu0 0
        %1819 = vmatpush1.bf16.msra.mxu0 0
        %1820 = vmatprep.subr.bf16.mxu0 0
        %1821 = vmatpush1.bf16.msra.mxu0 0
        %1822 = vmatprep.subr.bf16.mxu0 0
        %1823 = vmatpush1.bf16.msra.mxu0 0
        %1824 = vmatprep.subr.bf16.mxu0 0
        %1825 = vmatpush1.bf16.msra.mxu0 0
        %1826 = vmatprep.mubr.bf16.mxu0 0
        %1827 = vmatmul.mubr.bf16.gmra.mrb[0].mxu0 %v1685
        %v1828 = vpop.f32.mrb[0].mxu0
        %v1829 = vadd.f32 %v1707, %v1828
        %v1830 = vpop.f32.mrb[0].mxu0
        %v1831 = vadd.f32 %v1711, %v1830
        %v1832 = vpop.f32.mrb[0].mxu0
        %v1833 = vpop.f32.mrb[0].mxu0
        %1834 = vdwg.mxu0
        %v1835 = vmul.f32 %v1829, 0.5
        %v1836 = vmul.f32 %v1831, 0.5
        %v1837 = vmul.f32 %v1829, 0.044715
        %v1838 = vmul.f32 %v1831, 0.044715
        %v1839 = vmul.f32 %v1837, %v1829
        %v1840 = vmul.f32 %v1838, %v1831
        %v1841 = vmul.f32 %v1839, %v1829
        %v1842 = vmul.f32 %v1840, %v1831
        %v1843 = vadd.f32 %v1829, %v1841
        %v1844 = vadd.f32 %v1831, %v1842
        %v1845 = vmul.f32 %v1843, 0.7978846
        %v1846 = vmul.f32 %v1844, 0.7978846
        %v1847 = vtanh.pop %v1845
        %v1848 = vtanh.pop %v1846
        %v1849 = vadd.f32 %v1847, 1.0
        %v1850 = vadd.f32 %v1848, 1.0
        %v1851 = vmul.f32 %v1835, %v1849
        %v1852 = vmul.f32 %v1836, %v1850
        %v1853 = vpack.c.bf16 %v1851, %v1851
        %v1854 = vpack.c.bf16 %v1852, %v1852
        %v1855 = vld [vmem:[%s763] sm:$0xf]
        %v1856 = vld [vmem:[%s763 + $0x4] sm:$0xf]
        %v1857 = vld [vmem:[%s763 + $0x8] sm:$0xf]
        %v1858 = vld [vmem:[%s763 + $0xc] sm:$0xf]
        %v1859 = vld [vmem:[%s763 + $0x10] sm:$0xf]
        %v1860 = vld [vmem:[%s763 + $0x14] sm:$0xf]
        %v1861 = vld [vmem:[%s763 + $0x18] sm:$0xf]
        %v1862 = vld [vmem:[%s763 + $0x1c] sm:$0xf]
        %v1863 = vld [vmem:[%s763 + $0x20] sm:$0xf]
        %v1864 = vld [vmem:[%s763 + $0x24] sm:$0xf]
        %v1865 = vld [vmem:[%s763 + $0x28] sm:$0xf]
        %v1866 = vld [vmem:[%s763 + $0x2c] sm:$0xf]
        %v1867 = vld [vmem:[%s763 + $0x30] sm:$0xf]
        %v1868 = vld [vmem:[%s763 + $0x34] sm:$0xf]
        %v1869 = vld [vmem:[%s763 + $0x38] sm:$0xf]
        %v1870 = vld [vmem:[%s763 + $0x3c] sm:$0xf]
        %v1871 = vld [vmem:[%s763 + $0x40] sm:$0xf]
        %v1872 = vld [vmem:[%s763 + $0x44] sm:$0xf]
        %v1873 = vld [vmem:[%s763 + $0x48] sm:$0xf]
        %v1874 = vld [vmem:[%s763 + $0x4c] sm:$0xf]
        %v1875 = vld [vmem:[%s763 + $0x50] sm:$0xf]
        %v1876 = vld [vmem:[%s763 + $0x54] sm:$0xf]
        %v1877 = vld [vmem:[%s763 + $0x58] sm:$0xf]
        %v1878 = vld [vmem:[%s763 + $0x5c] sm:$0xf]
        %v1879 = vld [vmem:[%s763 + $0x60] sm:$0xf]
        %v1880 = vld [vmem:[%s763 + $0x64] sm:$0xf]
        %v1881 = vld [vmem:[%s763 + $0x68] sm:$0xf]
        %v1882 = vld [vmem:[%s763 + $0x6c] sm:$0xf]
        %v1883 = vld [vmem:[%s763 + $0x70] sm:$0xf]
        %v1884 = vld [vmem:[%s763 + $0x74] sm:$0xf]
        %v1885 = vld [vmem:[%s763 + $0x78] sm:$0xf]
        %v1886 = vld [vmem:[%s763 + $0x7c] sm:$0xf]
        %v1887 = vld [vmem:[%s898] sm:$0x1]
        %v1889 = vlaneseq
        %v1890 = vshrl.u32 %v1889, 7
        %v1891 = vsub.s32 0, %v1890
        %v1892 = vrot.slane %v1887, %v1891
        %v1926 = vunpack.c.l.b16 %v1855
        %v1927 = vunpack.c.l.b16 %v1856
        %v1928 = vunpack.c.l.b16 %v1857
        %v1929 = vunpack.c.l.b16 %v1858
        %v1930 = vunpack.c.l.b16 %v1859
        %v1931 = vunpack.c.l.b16 %v1860
        %v1932 = vunpack.c.l.b16 %v1861
        %v1933 = vunpack.c.l.b16 %v1862
        %v1934 = vunpack.c.l.b16 %v1863
        %v1935 = vunpack.c.l.b16 %v1864
        %v1936 = vunpack.c.l.b16 %v1865
        %v1937 = vunpack.c.l.b16 %v1866
        %v1938 = vunpack.c.l.b16 %v1867
        %v1939 = vunpack.c.l.b16 %v1868
        %v1940 = vunpack.c.l.b16 %v1869
        %v1941 = vunpack.c.l.b16 %v1870
        %v1942 = vunpack.c.l.b16 %v1871
        %v1943 = vunpack.c.l.b16 %v1872
        %v1944 = vunpack.c.l.b16 %v1873
        %v1945 = vunpack.c.l.b16 %v1874
        %v1946 = vunpack.c.l.b16 %v1875
        %v1947 = vunpack.c.l.b16 %v1876
        %v1948 = vunpack.c.l.b16 %v1877
        %v1949 = vunpack.c.l.b16 %v1878
        %v1950 = vunpack.c.l.b16 %v1879
        %v1951 = vunpack.c.l.b16 %v1880
        %v1952 = vunpack.c.l.b16 %v1881
        %v1953 = vunpack.c.l.b16 %v1882
        %v1954 = vunpack.c.l.b16 %v1883
        %v1955 = vunpack.c.l.b16 %v1884
        %v1956 = vunpack.c.l.b16 %v1885
        %v1957 = vunpack.c.l.b16 %v1886
        %v1958 = vpack.c.b16 %v1927, %v1926
        %v1959 = vpack.c.b16 %v1929, %v1928
        %v1960 = vpack.c.b16 %v1931, %v1930
        %v1961 = vpack.c.b16 %v1933, %v1932
        %v1962 = vpack.c.b16 %v1935, %v1934
        %v1963 = vpack.c.b16 %v1937, %v1936
        %v1964 = vpack.c.b16 %v1939, %v1938
        %v1965 = vpack.c.b16 %v1941, %v1940
        %v1966 = vpack.c.b16 %v1943, %v1942
        %v1967 = vpack.c.b16 %v1945, %v1944
        %v1968 = vpack.c.b16 %v1947, %v1946
        %v1969 = vpack.c.b16 %v1949, %v1948
        %v1970 = vpack.c.b16 %v1951, %v1950
        %v1971 = vpack.c.b16 %v1953, %v1952
        %v1972 = vpack.c.b16 %v1955, %v1954
        %v1973 = vpack.c.b16 %v1957, %v1956
        %1990 = vmatprep.subr.bf16.mxu0 0
        %1991 = vmatpush1.bf16.msra.mxu0 %v1958
        %1992 = vmatprep.subr.bf16.mxu0 0
        %1993 = vmatpush1.bf16.msra.mxu0 %v1959
        %1994 = vmatprep.subr.bf16.mxu0 0
        %1995 = vmatpush1.bf16.msra.mxu0 %v1960
        %1996 = vmatprep.subr.bf16.mxu0 0
        %1997 = vmatpush1.bf16.msra.mxu0 %v1961
        %1998 = vmatprep.subr.bf16.mxu0 0
        %1999 = vmatpush1.bf16.msra.mxu0 %v1962
        %2000 = vmatprep.subr.bf16.mxu0 0
        %2001 = vmatpush1.bf16.msra.mxu0 %v1963
        %2002 = vmatprep.subr.bf16.mxu0 0
        %2003 = vmatpush1.bf16.msra.mxu0 %v1964
        %2004 = vmatprep.subr.bf16.mxu0 0
        %2005 = vmatpush1.bf16.msra.mxu0 %v1965
        %2006 = vmatprep.subr.bf16.mxu0 0
        %2007 = vmatpush1.bf16.msra.mxu0 %v1966
        %2008 = vmatprep.subr.bf16.mxu0 0
        %2009 = vmatpush1.bf16.msra.mxu0 %v1967
        %2010 = vmatprep.subr.bf16.mxu0 0
        %2011 = vmatpush1.bf16.msra.mxu0 %v1968
        %2012 = vmatprep.subr.bf16.mxu0 0
        %2013 = vmatpush1.bf16.msra.mxu0 %v1969
        %2014 = vmatprep.subr.bf16.mxu0 0
        %2015 = vmatpush1.bf16.msra.mxu0 %v1970
        %2016 = vmatprep.subr.bf16.mxu0 0
        %2017 = vmatpush1.bf16.msra.mxu0 %v1971
        %2018 = vmatprep.subr.bf16.mxu0 0
        %2019 = vmatpush1.bf16.msra.mxu0 %v1972
        %2020 = vmatprep.subr.bf16.mxu0 0
        %2021 = vmatpush1.bf16.msra.mxu0 %v1973
        %2022 = vmatprep.mubr.bf16.mxu0 %v1854
        %2023 = vmatmul.mubr.bf16.gmra.mrb[0].mxu0 %v1853
        %v2024 = vpop.f32.mrb[0].mxu0
        %v2025 = vadd.f32 %v1892, %v2024
        %v2026 = vpop.f32.mrb[0].mxu0
        %v2027 = vpop.f32.mrb[0].mxu0
        %v2028 = vpop.f32.mrb[0].mxu0
        %2029 = vdwg.mxu0
        %v2030 = vadd.f32 %v2025, %v1684
        %v2031 = vld [vmem:[%s901] sm:$0x1]
        %v2032 = vld [vmem:[%s904] sm:$0x1]
        %2033 = vadd.xlane.f32.xlu0 %v2030
        %v2034 = vpop.xlane.xlu0 %2033
        %v2035 = vmul.f32 %v2034, %v1661
        %v2036 = vsub.f32 %v2030, %v2035
        %v2037 = vmul.f32 %v2036, %v2036
        %2038 = vadd.xlane.f32.xlu0 %v2037
        %v2039 = vpop.xlane.xlu0 %2038
        %v2040 = vmul.f32 %v2039, %v1661
        %v2041 = vadd.f32 %v2040, 1e-12
        %v2042 = vrsqrt.pop %v2041
        %v2043 = vmul.f32 %v2036, %v2042
        %v2045 = vlaneseq
        %v2046 = vshrl.u32 %v2045, 7
        %v2047 = vsub.s32 0, %v2046
        %v2048 = vrot.slane %v2031, %v2047
        %v2050 = vmul.f32 %v2043, %v2048
        %v2052 = vlaneseq
        %v2053 = vshrl.u32 %v2052, 7
        %v2054 = vsub.s32 0, %v2053
        %v2055 = vrot.slane %v2032, %v2054
        %v2057 = vadd.f32 %v2050, %v2055
        %2058 = vst [vmem:[#allocation2] sm:$0xff] %v2057
        %p2059 = scmp.eq.s32.totalorder %s45, 1
        // Predicated region
        $region117: #{tpu_custom_call.1} parent=99 // pred_check
          %p2060 = pneg %p2059
        $region118: #{tpu_custom_call.1} parent=99 // pred_check_branch
          %2062 = sbr.rel (%p2060) target = $region120
        $region119: #{tpu_custom_call.1} parent=99 // pred_region
          %v2063 = vld [vmem:[%s16] sm:$0xff]
          %v2064 = vld [vmem:[%s16 + $0x8] sm:$0xff]
          %v2065 = vld [vmem:[%s16 + $0x10] sm:$0xff]
          %v2066 = vld [vmem:[%s16 + $0x18] sm:$0xff]
          %v2067 = vld [vmem:[%s16 + $0x20] sm:$0xff]
          %v2068 = vld [vmem:[%s16 + $0x28] sm:$0xff]
          %v2069 = vld [vmem:[%s16 + $0x30] sm:$0xff]
          %v2070 = vld [vmem:[%s16 + $0x38] sm:$0xff]
          %v2071 = vld [vmem:[%s16 + $0x40] sm:$0xff]
          %v2072 = vld [vmem:[%s16 + $0x48] sm:$0xff]
          %v2073 = vld [vmem:[%s16 + $0x50] sm:$0xff]
          %v2074 = vld [vmem:[%s16 + $0x58] sm:$0xff]
          %v2075 = vld [vmem:[%s16 + $0x60] sm:$0xff]
          %v2076 = vld [vmem:[%s16 + $0x68] sm:$0xff]
          %v2077 = vld [vmem:[%s16 + $0x70] sm:$0xff]
          %v2078 = vld [vmem:[%s16 + $0x78] sm:$0xff]
          %v2079 = vld [vmem:[%s17] sm:$0x1]
          %2080 = vmatprep.subr.mxu0 0.0
          %2081 = vmatpush1.msra.mxu0 %v2063
          %2082 = vmatprep.subr.mxu0 0.0
          %2083 = vmatpush1.msra.mxu0 %v2064
          %2084 = vmatprep.subr.mxu0 0.0
          %2085 = vmatpush1.msra.mxu0 %v2065
          %2086 = vmatprep.subr.mxu0 0.0
          %2087 = vmatpush1.msra.mxu0 %v2066
          %2088 = vmatprep.subr.mxu0 0.0
          %2089 = vmatpush1.msra.mxu0 %v2067
          %2090 = vmatprep.subr.mxu0 0.0
          %2091 = vmatpush1.msra.mxu0 %v2068
          %2092 = vmatprep.subr.mxu0 0.0
          %2093 = vmatpush1.msra.mxu0 %v2069
          %2094 = vmatprep.subr.mxu0 0.0
          %2095 = vmatpush1.msra.mxu0 %v2070
          %2096 = vmatprep.subr.mxu0 0.0
          %2097 = vmatpush1.msra.mxu0 %v2071
          %2098 = vmatprep.subr.mxu0 0.0
          %2099 = vmatpush1.msra.mxu0 %v2072
          %2100 = vmatprep.subr.mxu0 0.0
          %2101 = vmatpush1.msra.mxu0 %v2073
          %2102 = vmatprep.subr.mxu0 0.0
          %2103 = vmatpush1.msra.mxu0 %v2074
          %2104 = vmatprep.subr.mxu0 0.0
          %2105 = vmatpush1.msra.mxu0 %v2075
          %2106 = vmatprep.subr.mxu0 0.0
          %2107 = vmatpush1.msra.mxu0 %v2076
          %2108 = vmatprep.subr.mxu0 0.0
          %2109 = vmatpush1.msra.mxu0 %v2077
          %2110 = vmatprep.subr.mxu0 0.0
          %2111 = vmatpush1.msra.mxu0 %v2078
          %2112 = vmatprep.subr.mxu0 0.0
          %2113 = vmatpush1.msra.mxu0 0.0
          %2114 = vmatprep.subr.mxu0 0.0
          %2115 = vmatpush1.msra.mxu0 0.0
          %2116 = vmatprep.subr.mxu0 0.0
          %2117 = vmatpush1.msra.mxu0 0.0
          %2118 = vmatprep.subr.mxu0 0.0
          %2119 = vmatpush1.msra.mxu0 0.0
          %2120 = vmatprep.subr.mxu0 0.0
          %2121 = vmatpush1.msra.mxu0 0.0
          %2122 = vmatprep.subr.mxu0 0.0
          %2123 = vmatpush1.msra.mxu0 0.0
          %2124 = vmatprep.subr.mxu0 0.0
          %2125 = vmatpush1.msra.mxu0 0.0
          %2126 = vmatprep.subr.mxu0 0.0
          %2127 = vmatpush1.msra.mxu0 0.0
          %2128 = vmatprep.subr.mxu0 0.0
          %2129 = vmatpush1.msra.mxu0 0.0
          %2130 = vmatprep.subr.mxu0 0.0
          %2131 = vmatpush1.msra.mxu0 0.0
          %2132 = vmatprep.subr.mxu0 0.0
          %2133 = vmatpush1.msra.mxu0 0.0
          %2134 = vmatprep.subr.mxu0 0.0
          %2135 = vmatpush1.msra.mxu0 0.0
          %2136 = vmatprep.subr.mxu0 0.0
          %2137 = vmatpush1.msra.mxu0 0.0
          %2138 = vmatprep.subr.mxu0 0.0
          %2139 = vmatpush1.msra.mxu0 0.0
          %2140 = vmatprep.subr.mxu0 0.0
          %2141 = vmatpush1.msra.mxu0 0.0
          %2142 = vmatprep.subr.mxu0 0.0
          %2143 = vmatpush1.msra.mxu0 0.0
          %2144 = vmatprep.mubr.f32.mxu0 0.0
          %2145 = vmatmul.mubr.f32.gmra.mrb[0].mxu0 %v2057
          %v2146 = vpop.f32.mrb[0].mxu0
          %v2147 = vadd.f32 %v2079, %v2146
          %v2148 = vpop.f32.mrb[0].mxu0
          %2149 = vdwg.mxu0
          %v2150 = vmax.f32 %v2147, 0.0
          %v2151 = vld [vmem:[%s18] sm:$0xff]
          %v2152 = vld [vmem:[%s18 + $0x8] sm:$0xff]
          %v2153 = vld [vmem:[%s18 + $0x10] sm:$0xff]
          %v2154 = vld [vmem:[%s18 + $0x18] sm:$0xff]
          %v2155 = vld [vmem:[%s19] sm:$0x1]
          %vm2156 = vcmask 261120
          %v2158 = vsel %vm2156, %v2150, 0
          %2160 = vmatprep.subr.mxu0 0.0
          %2161 = vmatpush1.msra.mxu0 %v2151
          %2162 = vmatprep.subr.mxu0 0.0
          %2163 = vmatpush1.msra.mxu0 %v2152
          %2164 = vmatprep.subr.mxu0 0.0
          %2165 = vmatpush1.msra.mxu0 %v2153
          %2166 = vmatprep.subr.mxu0 0.0
          %2167 = vmatpush1.msra.mxu0 %v2154
          %2168 = vmatprep.subr.mxu0 0.0
          %2169 = vmatpush1.msra.mxu0 0.0
          %2170 = vmatprep.subr.mxu0 0.0
          %2171 = vmatpush1.msra.mxu0 0.0
          %2172 = vmatprep.subr.mxu0 0.0
          %2173 = vmatpush1.msra.mxu0 0.0
          %2174 = vmatprep.subr.mxu0 0.0
          %2175 = vmatpush1.msra.mxu0 0.0
          %2176 = vmatprep.subr.mxu0 0.0
          %2177 = vmatpush1.msra.mxu0 0.0
          %2178 = vmatprep.subr.mxu0 0.0
          %2179 = vmatpush1.msra.mxu0 0.0
          %2180 = vmatprep.subr.mxu0 0.0
          %2181 = vmatpush1.msra.mxu0 0.0
          %2182 = vmatprep.subr.mxu0 0.0
          %2183 = vmatpush1.msra.mxu0 0.0
          %2184 = vmatprep.subr.mxu0 0.0
          %2185 = vmatpush1.msra.mxu0 0.0
          %2186 = vmatprep.subr.mxu0 0.0
          %2187 = vmatpush1.msra.mxu0 0.0
          %2188 = vmatprep.subr.mxu0 0.0
          %2189 = vmatpush1.msra.mxu0 0.0
          %2190 = vmatprep.subr.mxu0 0.0
          %2191 = vmatpush1.msra.mxu0 0.0
          %2192 = vmatprep.subr.mxu0 0.0
          %2193 = vmatpush1.msra.mxu0 0.0
          %2194 = vmatprep.subr.mxu0 0.0
          %2195 = vmatpush1.msra.mxu0 0.0
          %2196 = vmatprep.subr.mxu0 0.0
          %2197 = vmatpush1.msra.mxu0 0.0
          %2198 = vmatprep.subr.mxu0 0.0
          %2199 = vmatpush1.msra.mxu0 0.0
          %2200 = vmatprep.subr.mxu0 0.0
          %2201 = vmatpush1.msra.mxu0 0.0
          %2202 = vmatprep.subr.mxu0 0.0
          %2203 = vmatpush1.msra.mxu0 0.0
          %2204 = vmatprep.subr.mxu0 0.0
          %2205 = vmatpush1.msra.mxu0 0.0
          %2206 = vmatprep.subr.mxu0 0.0
          %2207 = vmatpush1.msra.mxu0 0.0
          %2208 = vmatprep.subr.mxu0 0.0
          %2209 = vmatpush1.msra.mxu0 0.0
          %2210 = vmatprep.subr.mxu0 0.0
          %2211 = vmatpush1.msra.mxu0 0.0
          %2212 = vmatprep.subr.mxu0 0.0
          %2213 = vmatpush1.msra.mxu0 0.0
          %2214 = vmatprep.subr.mxu0 0.0
          %2215 = vmatpush1.msra.mxu0 0.0
          %2216 = vmatprep.subr.mxu0 0.0
          %2217 = vmatpush1.msra.mxu0 0.0
          %2218 = vmatprep.subr.mxu0 0.0
          %2219 = vmatpush1.msra.mxu0 0.0
          %2220 = vmatprep.subr.mxu0 0.0
          %2221 = vmatpush1.msra.mxu0 0.0
          %2222 = vmatprep.subr.mxu0 0.0
          %2223 = vmatpush1.msra.mxu0 0.0
          %2224 = vmatprep.mubr.f32.mxu0 0.0
          %2225 = vmatmul.mubr.f32.gmra.mrb[0].mxu0 %v2158
          %v2226 = vpop.f32.mrb[0].mxu0
          %v2227 = vadd.f32 %v2155, %v2226
          %v2228 = vpop.f32.mrb[0].mxu0
          %2229 = vdwg.mxu0
          %vm2230 = vcmask 32768
          %2231 = vst.msk [vmem:[%s866] sm:$0x1] %vm2230, %v2227
        $region120: #{tpu_custom_call.1} parent=99 // pred_fallthru
          _
        %s2232 = sand.u32 %s550, 1
        %s2233 = scalar_lea.sflag [#allocation5], %s2232
        %s2234 = sand.u32 %s550, 1
        %s2235 = scalar_lea.vmem [#allocation9], %s2234
        // Predicated region
        $region121: #{tpu_custom_call.1} parent=99 // pred_check
          %p2236 = pneg %p560
        $region122: #{tpu_custom_call.1} parent=99 // pred_check_branch
          %2238 = sbr.rel (%p2236) target = $region124
        $region123: #{tpu_custom_call.1} parent=99 // pred_region
          %s2240 = ssub.s32 16, 16
          %2241 = vsyncadd %s2233, %s2240
          %s2242 = smul.addr %s44, 16
          %s2243 = scalar_lea.hbm %s20, %s2242
          %s2245 = sshll.u32 %s2235, 4
          %s2246 = int_to_ptr.vmem [resolvable:$true] %s2245
          %2248 = dma.vmem_to_hbm [thread:$0]  %s2246, 16, %s2243, %s2233
        $region124: #{tpu_custom_call.1} parent=99 // pred_fallthru
          _
      $region100: #{tpu_custom_call.1} parent=5 // pred_fallthru
        _
      %p2249 = scmp.le.s32.totalorder 2, %s35
      // Predicated region
      $region125: #{tpu_custom_call.1} parent=5 // pred_check
        %p2250 = pneg %p2249
      $region126: #{tpu_custom_call.1} parent=5 // pred_check_branch
        %2252 = sbr.rel (%p2250) target = $region128
      $region127: #{tpu_custom_call.1} parent=5 // pred_region
        %s2253 = ssub.s32 %s35, 2
        // Predicated region
        $region129: #{tpu_custom_call.1} parent=127 // pred_check
          %p2254 = pneg %p566
        $region130: #{tpu_custom_call.1} parent=127 // pred_check_branch
          %2256 = sbr.rel (%p2254) target = $region132
        $region131: #{tpu_custom_call.1} parent=127 // pred_region
          %s2257 = sand.u32 %s551, 1
          %s2258 = scalar_lea.sflag [#allocation5], %s2257
          %s2259 = sand.u32 %s551, 1
          %s2260 = scalar_lea.vmem [#allocation9], %s2259
          %2261 = dma.done %s2258, 16
        $region132: #{tpu_custom_call.1} parent=127 // pred_fallthru
          _
      $region128: #{tpu_custom_call.1} parent=5 // pred_fallthru
        _
    $region6: #{tpu_custom_call.1} parent=1 // loop_footer
      %s39 = sadd.s32 1, %s35
    $region7: #{tpu_custom_call.1} parent=1 // loop_footer_branch
      %34 = sbr.rel target = $region3
    $region8: #{tpu_custom_call.1} parent=1 // loop_exit
      _
    %2262 = vsyncpa [#allocation4], 1
    %s2263 = scalar_lea.sflag [#allocation4], 1
    %2264 = vsyncpa %s2263, 1
    %2265 = vsyncpa [#allocation7], 1
    %s2266 = scalar_lea.sflag [#allocation7], 1
    %2267 = vsyncpa %s2266, 1
    %2268 = vsyncpa [#allocation5], 1
    %s2269 = scalar_lea.sflag [#allocation5], 1
    %2270 = vsyncpa %s2269, 1

</llo_original>
